<compile_context>
chip_gen: v5e
topology: v5e:2x2
jax: 0.10.0
libtpu: 0.0.40
codegen_flags: <defaults>
</compile_context>

<pallas_src>
import functools
import math

import jax
import jax.numpy as jnp
from jax.experimental import pallas as pl
from jax.experimental.pallas import tpu as pltpu

# ---------------- synthetic BERT config ----------------
VOCAB = 100
VOCAB_PAD = 128           # lane-dense padded vocab for the in-kernel one-hot gather
HIDDEN = 32
NUM_LAYERS = 2
NUM_HEADS = 2
HEAD_DIM = HIDDEN // NUM_HEADS
FFN = 64
MAX_POS = 16
EPS = 1e-12
NUM_CLASSES_A = 3
NUM_CLASSES_B = 2
C_PAD = 128               # lane-dense padded width for the fused classifier-head output


def _num_grid_steps(batch):
    """2 grid steps (one per TensorCore) on v7x, otherwise a single step."""
    try:
        kind = jax.devices()[0].device_kind.lower()
    except Exception:  # pragma: no cover
        kind = ""
    n_tc = 2 if ("v7" in kind or "7x" in kind) else 1
    return n_tc if (batch >= n_tc and batch % n_tc == 0) else 1


# ---------------- fused Pallas kernel ----------------
def _fused_kernel(ids_ref, bias_ref, pool_ref, wemb_ref, pt_ref, eg_ref, eb_ref,
                  wqkv_ref, bqkv_ref, wo_ref, bo_ref, ln1g_ref, ln1b_ref,
                  w1_ref, b1_ref, w2_ref, b2_ref, ln2g_ref, ln2b_ref,
                  wh_ref, bh_ref, out_ref):
    """Whole forward for one block of flattened sequences (grid axis = block)."""
    R = bias_ref.shape[1]            # seqs_per_step * S flattened rows

    def layer_norm(h, g, b):
        mean = jnp.mean(h, axis=-1, keepdims=True)
        var = jnp.mean(jnp.square(h - mean), axis=-1, keepdims=True)
        return (h - mean) * jax.lax.rsqrt(var + EPS) * g + b

    # -- in-kernel embedding lookup: one-hot (R, 128) @ (128, H), exact in f32 --
    ids = ids_ref[0]                                                    # (R, 1) int32
    iota = jax.lax.broadcasted_iota(jnp.int32, (R, VOCAB_PAD), 1)
    onehot = (iota == ids).astype(jnp.float32)                          # (R, 128)
    x = jnp.dot(onehot, wemb_ref[...],
                preferred_element_type=jnp.float32) + pt_ref[...]       # (R, H)
    x = layer_norm(x, eg_ref[...], eb_ref[...])

    bias = bias_ref[0]                                                  # (R, R) block-diag mask bias
    scale = jnp.float32(1.0 / math.sqrt(HEAD_DIM))

    for l in range(NUM_LAYERS):
        x_bf = x.astype(jnp.bfloat16)
        attn = None
        for h in range(NUM_HEADS):
            qi = (l * NUM_HEADS + h) * 3
            # per-head projections: every tile starts at lane offset 0
            q = jnp.dot(x_bf, wqkv_ref[qi],
                        preferred_element_type=jnp.float32) + bqkv_ref[qi]
            k = jnp.dot(x_bf, wqkv_ref[qi + 1],
                        preferred_element_type=jnp.float32) + bqkv_ref[qi + 1]
            v = jnp.dot(x_bf, wqkv_ref[qi + 2],
                        preferred_element_type=jnp.float32) + bqkv_ref[qi + 2]
            s = jnp.einsum("qd,kd->qk", q.astype(jnp.bfloat16), k.astype(jnp.bfloat16),
                           preferred_element_type=jnp.float32) * scale + bias
            m = jnp.max(s, axis=-1, keepdims=True)
            p = jnp.exp(s - m)
            p = p * pl.reciprocal(jnp.sum(p, axis=-1, keepdims=True), approx=True)
            ctx = jnp.dot(p.astype(jnp.bfloat16), v.astype(jnp.bfloat16),
                          preferred_element_type=jnp.float32)            # (R, D)
            contrib = jnp.dot(ctx.astype(jnp.bfloat16), wo_ref[l * NUM_HEADS + h],
                              preferred_element_type=jnp.float32)        # (R, H)
            attn = contrib if attn is None else attn + contrib
        # fold the output-projection bias into the residual add
        x = layer_norm(x + attn + bo_ref[l], ln1g_ref[l], ln1b_ref[l])

        # FFN
        x_bf = x.astype(jnp.bfloat16)
        hmid = jnp.dot(x_bf, w1_ref[l], preferred_element_type=jnp.float32) + b1_ref[l]
        # GELU (tanh approximation)
        # TODO(synk): BERT uses exact erf-GELU; tanh approximation used here.
        c = jnp.float32(0.7978845608028654)  # sqrt(2/pi)
        hmid = 0.5 * hmid * (1.0 + jnp.tanh(c * (hmid + 0.044715 * hmid * hmid * hmid)))
        f = jnp.dot(hmid.astype(jnp.bfloat16), w2_ref[l],
                    preferred_element_type=jnp.float32) + b2_ref[l]
        x = layer_norm(x + f, ln2g_ref[l], ln2b_ref[l])

    # masked mean pooling per sequence: block-diagonal (BPS, R) pooling matrix
    pool = pool_ref[0]                                                  # (BPS, R)
    summed = jnp.dot(pool.astype(jnp.bfloat16), x.astype(jnp.bfloat16),
                     preferred_element_type=jnp.float32)                # (BPS, H)
    denom = jnp.maximum(jnp.sum(pool, axis=-1, keepdims=True), 1e-9)
    emb = summed * pl.reciprocal(denom, approx=True)

    # fused classifier heads (A|B concatenated, zero-padded to C_PAD lanes)
    logits = jnp.dot(emb.astype(jnp.bfloat16), wh_ref[...],
                     preferred_element_type=jnp.float32) + bh_ref[...]  # (BPS, 128)
    out_ref[...] = logits[None, :, :]


def fused_forward(ids, attn_bias, pool, wemb, pos_type, eg, eb,
                  wqkv, bqkv, wo, bo, ln1g, ln1b, w1, b1, w2, b2,
                  ln2g, ln2b, wh, bh):
    G, R, _ = attn_bias.shape
    BPS = pool.shape[1]

    def rep(a):
        nd = a.ndim
        return pl.BlockSpec(a.shape, lambda g, _nd=nd: (0,) * _nd)

    in_specs = [
        pl.BlockSpec((1, R, 1), lambda g: (g, 0, 0)),      # token ids
        pl.BlockSpec((1, R, R), lambda g: (g, 0, 0)),      # block-diagonal attn bias
        pl.BlockSpec((1, BPS, R), lambda g: (g, 0, 0)),    # pooling matrix
    ] + [rep(a) for a in (wemb, pos_type, eg, eb, wqkv, bqkv, wo, bo,
                          ln1g, ln1b, w1, b1, w2, b2, ln2g, ln2b, wh, bh)]

    return pl.pallas_call(
        _fused_kernel,
        out_shape=jax.ShapeDtypeStruct((G, BPS, C_PAD), jnp.float32),
        grid=(G,),
        in_specs=in_specs,
        out_specs=pl.BlockSpec((1, BPS, C_PAD), lambda g: (g, 0, 0)),
        compiler_params=pltpu.CompilerParams(dimension_semantics=("parallel",)),
    )(ids, attn_bias, pool, wemb, pos_type, eg, eb, wqkv, bqkv, wo, bo,
      ln1g, ln1b, w1, b1, w2, b2, ln2g, ln2b, wh, bh)


# ---------------- parameter init (deterministic) ----------------
def init_params(key):
    scale = 0.02

    def nrm(k, shape):
        return scale * jax.random.normal(k, shape, dtype=jnp.float32)

    keys = jax.random.split(key, 4 + NUM_LAYERS)
    params = {
        "word_emb": nrm(keys[0], (VOCAB, HIDDEN)),
        "pos_emb": nrm(keys[1], (MAX_POS, HIDDEN)),
        "type_emb": nrm(keys[2], (2, HIDDEN)),
        "emb_ln_g": jnp.ones((HIDDEN,), jnp.float32),
        "emb_ln_b": jnp.zeros((HIDDEN,), jnp.float32),
    }
    layers = []
    for l in range(NUM_LAYERS):
        lk = jax.random.split(keys[4 + l], 8)
        layers.append({
            "wq": nrm(lk[0], (HIDDEN, HIDDEN)), "bq": jnp.zeros((HIDDEN,), jnp.float32),
            "wk": nrm(lk[1], (HIDDEN, HIDDEN)), "bk": jnp.zeros((HIDDEN,), jnp.float32),
            "wv": nrm(lk[2], (HIDDEN, HIDDEN)), "bv": jnp.zeros((HIDDEN,), jnp.float32),
            "wo": nrm(lk[3], (HIDDEN, HIDDEN)), "bo": jnp.zeros((HIDDEN,), jnp.float32),
            "ln1_g": jnp.ones((HIDDEN,), jnp.float32), "ln1_b": jnp.zeros((HIDDEN,), jnp.float32),
            "w1": nrm(lk[4], (HIDDEN, FFN)), "b1": jnp.zeros((FFN,), jnp.float32),
            "w2": nrm(lk[5], (FFN, HIDDEN)), "b2": jnp.zeros((HIDDEN,), jnp.float32),
            "ln2_g": jnp.ones((HIDDEN,), jnp.float32), "ln2_b": jnp.zeros((HIDDEN,), jnp.float32),
        })
    params["layers"] = layers
    hk = jax.random.split(keys[3], 2)
    params["wa"] = nrm(hk[0], (HIDDEN, NUM_CLASSES_A))
    params["ba"] = jnp.zeros((NUM_CLASSES_A,), jnp.float32)
    params["wb"] = nrm(hk[1], (HIDDEN, NUM_CLASSES_B))
    params["bb"] = jnp.zeros((NUM_CLASSES_B,), jnp.float32)
    return params


# ---------------- forward pass ----------------
@functools.partial(jax.jit, static_argnames=("grid_steps",))
def forward(params, input_ids, attention_mask, *, grid_steps=1):
    B, S = input_ids.shape
    G = grid_steps
    BPS = B // G          # sequences handled per grid step
    R = BPS * S           # flattened rows per grid step

    # --- block-diagonal attention bias and pooling matrix from the raw mask ---
    maskf = attention_mask.astype(jnp.float32)                          # (B, S)
    mg = maskf.reshape(G, BPS, S)
    eye = jnp.eye(BPS, dtype=jnp.float32)
    allowed = eye[None, :, None, :, None] * mg[:, None, None, :, :]     # (G,BPS,1,BPS,S)
    allowed = jnp.broadcast_to(allowed, (G, BPS, S, BPS, S)).reshape(G, R, R)
    attn_bias = (1.0 - allowed) * jnp.float32(-1e9)                     # (G, R, R)
    pool = (eye[None, :, :, None] * mg[:, None, :, :]).reshape(G, BPS, R)

    ids = input_ids.astype(jnp.int32).reshape(G, R, 1)

    # --- weight packing (tiny host-side constants, constant-folded by XLA) ---
    wemb = jnp.pad(params["word_emb"], ((0, VOCAB_PAD - VOCAB), (0, 0)))    # (128, H) f32
    pos_type = (jnp.tile(params["pos_emb"][:S], (BPS, 1))
                + params["type_emb"][0][None, :])                           # (R, H)
    eg = params["emb_ln_g"][None, :]
    eb = params["emb_ln_b"][None, :]

    layers = params["layers"]
    wqkv_l, bqkv_l, wo_l = [], [], []
    for l in layers:
        for h in range(NUM_HEADS):
            lo = h * HEAD_DIM
            for wn, bn in (("wq", "bq"), ("wk", "bk"), ("wv", "bv")):
                wqkv_l.append(l[wn][:, lo:lo + HEAD_DIM])
                bqkv_l.append(l[bn][lo:lo + HEAD_DIM][None, :])
            wo_l.append(l["wo"][lo:lo + HEAD_DIM, :])
    wqkv = jnp.stack(wqkv_l).astype(jnp.bfloat16)        # (L*NH*3, H, D)
    bqkv = jnp.stack(bqkv_l)                             # (L*NH*3, 1, D) f32
    wo = jnp.stack(wo_l).astype(jnp.bfloat16)            # (L*NH, D, H)
    bo = jnp.stack([l["bo"][None, :] for l in layers])
    ln1g = jnp.stack([l["ln1_g"][None, :] for l in layers])
    ln1b = jnp.stack([l["ln1_b"][None, :] for l in layers])
    w1 = jnp.stack([l["w1"] for l in layers]).astype(jnp.bfloat16)
    b1 = jnp.stack([l["b1"][None, :] for l in layers])
    w2 = jnp.stack([l["w2"] for l in layers]).astype(jnp.bfloat16)
    b2 = jnp.stack([l["b2"][None, :] for l in layers])
    ln2g = jnp.stack([l["ln2_g"][None, :] for l in layers])
    ln2b = jnp.stack([l["ln2_b"][None, :] for l in layers])

    n_cls = NUM_CLASSES_A + NUM_CLASSES_B
    wh = jnp.concatenate([params["wa"], params["wb"]], axis=1)              # (H, 5)
    wh = jnp.pad(wh, ((0, 0), (0, C_PAD - n_cls))).astype(jnp.bfloat16)     # (H, 128)
    bh = jnp.pad(jnp.concatenate([params["ba"], params["bb"]]),
                 (0, C_PAD - n_cls))[None, :]                               # (1, 128)

    logits = fused_forward(ids, attn_bias, pool, wemb, pos_type, eg, eb,
                           wqkv, bqkv, wo, bo, ln1g, ln1b, w1, b1, w2, b2,
                           ln2g, ln2b, wh, bh)
    logits = logits.reshape(B, C_PAD)
    return (logits[:, :NUM_CLASSES_A],
            logits[:, NUM_CLASSES_A:NUM_CLASSES_A + NUM_CLASSES_B])


# ---------------- main ----------------
if __name__ == "__main__":
    key = jax.random.PRNGKey(0)
    pkey, dkey, mkey = jax.random.split(key, 3)

    params = init_params(pkey)

    B, S = 2, 8
    input_ids = jax.random.randint(dkey, (B, S), 0, VOCAB, dtype=jnp.int32)
    # deterministic attention mask with some padding on the second sequence
    attention_mask = jnp.array(
        [[1, 1, 1, 1, 1, 1, 1, 1],
         [1, 1, 1, 1, 1, 0, 0, 0]], dtype=jnp.int32)

    grid_steps = _num_grid_steps(B)   # 2 on v7x (one step per TensorCore), else 1
    logits_a, logits_b = forward(params, input_ids, attention_mask,
                                 grid_steps=grid_steps)
    logits_a = jax.block_until_ready(logits_a)
    logits_b = jax.block_until_ready(logits_b)

    assert logits_a.shape == (B, NUM_CLASSES_A)
    assert logits_b.shape == (B, NUM_CLASSES_B)
    assert jnp.all(jnp.isfinite(logits_a)) and jnp.all(jnp.isfinite(logits_b))
    print("KERNEL_OK")
</pallas_src>

<mosaic_0001>
module attributes {stable_mosaic.version = 11 : i64} {
  func.func @_fused_kernel(%arg0: i32, %arg1: memref<1x16x1xi32, #tpu.memory_space<vmem>>, %arg2: memref<1x16x16xf32, #tpu.memory_space<vmem>>, %arg3: memref<1x2x16xf32, #tpu.memory_space<vmem>>, %arg4: memref<128x32xf32, #tpu.memory_space<vmem>>, %arg5: memref<16x32xf32, #tpu.memory_space<vmem>>, %arg6: memref<1x32xf32, #tpu.memory_space<vmem>>, %arg7: memref<1x32xf32, #tpu.memory_space<vmem>>, %arg8: memref<12x32x16xbf16, #tpu.memory_space<vmem>>, %arg9: memref<12x1x16xf32, #tpu.memory_space<vmem>>, %arg10: memref<4x16x32xbf16, #tpu.memory_space<vmem>>, %arg11: memref<2x1x32xf32, #tpu.memory_space<vmem>>, %arg12: memref<2x1x32xf32, #tpu.memory_space<vmem>>, %arg13: memref<2x1x32xf32, #tpu.memory_space<vmem>>, %arg14: memref<2x32x64xbf16, #tpu.memory_space<vmem>>, %arg15: memref<2x1x64xf32, #tpu.memory_space<vmem>>, %arg16: memref<2x64x32xbf16, #tpu.memory_space<vmem>>, %arg17: memref<2x1x32xf32, #tpu.memory_space<vmem>>, %arg18: memref<2x1x32xf32, #tpu.memory_space<vmem>>, %arg19: memref<2x1x32xf32, #tpu.memory_space<vmem>>, %arg20: memref<32x128xbf16, #tpu.memory_space<vmem>>, %arg21: memref<1x128xf32, #tpu.memory_space<vmem>>, %arg22: memref<1x2x128xf32, #tpu.memory_space<vmem>>) attributes {dimension_semantics = [#tpu.dimension_semantics<parallel>], iteration_bounds = array<i64: 1>, scalar_prefetch = 0 : i64, scratch_operands = 0 : i64, tpu.core_type = #tpu.core_type<tc>, window_params = [{transform_indices = @transform_0, window_bounds = array<i64: 1, 16, 1>}, {transform_indices = @transform_1, window_bounds = array<i64: 1, 16, 16>}, {transform_indices = @transform_2, window_bounds = array<i64: 1, 2, 16>}, {pipeline_mode = #tpu.pipeline_mode<synchronous>, transform_indices = @transform_3, window_bounds = array<i64: 128, 32>}, {pipeline_mode = #tpu.pipeline_mode<synchronous>, transform_indices = @transform_4, window_bounds = array<i64: 16, 32>}, {pipeline_mode = #tpu.pipeline_mode<synchronous>, transform_indices = @transform_5, window_bounds = array<i64: 1, 32>}, {pipeline_mode = #tpu.pipeline_mode<synchronous>, transform_indices = @transform_6, window_bounds = array<i64: 1, 32>}, {pipeline_mode = #tpu.pipeline_mode<synchronous>, transform_indices = @transform_7, window_bounds = array<i64: 12, 32, 16>}, {pipeline_mode = #tpu.pipeline_mode<synchronous>, transform_indices = @transform_8, window_bounds = array<i64: 12, 1, 16>}, {pipeline_mode = #tpu.pipeline_mode<synchronous>, transform_indices = @transform_9, window_bounds = array<i64: 4, 16, 32>}, {pipeline_mode = #tpu.pipeline_mode<synchronous>, transform_indices = @transform_10, window_bounds = array<i64: 2, 1, 32>}, {pipeline_mode = #tpu.pipeline_mode<synchronous>, transform_indices = @transform_11, window_bounds = array<i64: 2, 1, 32>}, {pipeline_mode = #tpu.pipeline_mode<synchronous>, transform_indices = @transform_12, window_bounds = array<i64: 2, 1, 32>}, {pipeline_mode = #tpu.pipeline_mode<synchronous>, transform_indices = @transform_13, window_bounds = array<i64: 2, 32, 64>}, {pipeline_mode = #tpu.pipeline_mode<synchronous>, transform_indices = @transform_14, window_bounds = array<i64: 2, 1, 64>}, {pipeline_mode = #tpu.pipeline_mode<synchronous>, transform_indices = @transform_15, window_bounds = array<i64: 2, 64, 32>}, {pipeline_mode = #tpu.pipeline_mode<synchronous>, transform_indices = @transform_16, window_bounds = array<i64: 2, 1, 32>}, {pipeline_mode = #tpu.pipeline_mode<synchronous>, transform_indices = @transform_17, window_bounds = array<i64: 2, 1, 32>}, {pipeline_mode = #tpu.pipeline_mode<synchronous>, transform_indices = @transform_18, window_bounds = array<i64: 2, 1, 32>}, {pipeline_mode = #tpu.pipeline_mode<synchronous>, transform_indices = @transform_19, window_bounds = array<i64: 32, 128>}, {pipeline_mode = #tpu.pipeline_mode<synchronous>, transform_indices = @transform_20, window_bounds = array<i64: 1, 128>}, {transform_indices = @transform_21, window_bounds = array<i64: 1, 2, 128>}]} {
    %c0 = arith.constant 0 : index
    %c0_0 = arith.constant 0 : index
    %c0_1 = arith.constant 0 : index
    %0 = vector.load %arg1[%c0, %c0_0, %c0_1] : memref<1x16x1xi32, #tpu.memory_space<vmem>>, vector<1x16x1xi32>
    %1 = vector.shape_cast %0 : vector<1x16x1xi32> to vector<16x1xi32>
    %2 = tpu.iota {dimensions = array<i32: 1>} : vector<16x128xi32>
    %3 = vector.broadcast %1 : vector<16x1xi32> to vector<16x128xi32>
    %4 = arith.cmpi eq, %2, %3 : vector<16x128xi32>
    %5 = arith.extui %4 : vector<16x128xi1> to vector<16x128xi32>
    %6 = arith.sitofp %5 : vector<16x128xi32> to vector<16x128xf32>
    %c0_2 = arith.constant 0 : index
    %c0_3 = arith.constant 0 : index
    %7 = vector.load %arg4[%c0_2, %c0_3] : memref<128x32xf32, #tpu.memory_space<vmem>>, vector<128x32xf32>
    %cst = arith.constant dense<0.000000e+00> : vector<16x32xf32>
    %8 = tpu.matmul %6, %7, %cst {dimension_numbers = #tpu.dot_dimension_numbers<[1], [0], [0], [1], [0, 0, 1, 1], [], []>} : vector<16x128xf32>, vector<128x32xf32>, vector<16x32xf32> -> vector<16x32xf32>
    %c0_4 = arith.constant 0 : index
    %c0_5 = arith.constant 0 : index
    %9 = vector.load %arg5[%c0_4, %c0_5] : memref<16x32xf32, #tpu.memory_space<vmem>>, vector<16x32xf32>
    %10 = arith.addf %8, %9 : vector<16x32xf32>
    %c0_6 = arith.constant 0 : index
    %c0_7 = arith.constant 0 : index
    %11 = vector.load %arg6[%c0_6, %c0_7] : memref<1x32xf32, #tpu.memory_space<vmem>>, vector<1x32xf32>
    %c0_8 = arith.constant 0 : index
    %c0_9 = arith.constant 0 : index
    %12 = vector.load %arg7[%c0_8, %c0_9] : memref<1x32xf32, #tpu.memory_space<vmem>>, vector<1x32xf32>
    %cst_10 = arith.constant dense<0.000000e+00> : vector<16xf32>
    %13 = vector.multi_reduction <add>, %10, %cst_10 [1] : vector<16x32xf32> to vector<16xf32>
    %14 = vector.shape_cast %13 : vector<16xf32> to vector<16x1xf32>
    %cst_11 = arith.constant 3.200000e+01 : f32
    %15 = vector.broadcast %cst_11 : f32 to vector<16x1xf32>
    %16 = arith.divf %14, %15 : vector<16x1xf32>
    %17 = vector.broadcast %16 : vector<16x1xf32> to vector<16x32xf32>
    %18 = arith.subf %10, %17 : vector<16x32xf32>
    %19 = arith.mulf %18, %18 : vector<16x32xf32>
    %cst_12 = arith.constant dense<0.000000e+00> : vector<16xf32>
    %20 = vector.multi_reduction <add>, %19, %cst_12 [1] : vector<16x32xf32> to vector<16xf32>
    %21 = vector.shape_cast %20 : vector<16xf32> to vector<16x1xf32>
    %cst_13 = arith.constant 3.200000e+01 : f32
    %22 = vector.broadcast %cst_13 : f32 to vector<16x1xf32>
    %23 = arith.divf %21, %22 : vector<16x1xf32>
    %24 = vector.broadcast %16 : vector<16x1xf32> to vector<16x32xf32>
    %25 = arith.subf %10, %24 : vector<16x32xf32>
    %cst_14 = arith.constant 9.99999996E-13 : f32
    %26 = vector.broadcast %cst_14 : f32 to vector<16x1xf32>
    %27 = arith.addf %23, %26 : vector<16x1xf32>
    %28 = math.rsqrt %27 : vector<16x1xf32>
    %29 = vector.broadcast %28 : vector<16x1xf32> to vector<16x32xf32>
    %30 = arith.mulf %25, %29 : vector<16x32xf32>
    %31 = vector.broadcast %11 : vector<1x32xf32> to vector<16x32xf32>
    %32 = arith.mulf %30, %31 : vector<16x32xf32>
    %33 = vector.broadcast %12 : vector<1x32xf32> to vector<16x32xf32>
    %34 = arith.addf %32, %33 : vector<16x32xf32>
    %c0_15 = arith.constant 0 : index
    %c0_16 = arith.constant 0 : index
    %c0_17 = arith.constant 0 : index
    %35 = vector.load %arg2[%c0_15, %c0_16, %c0_17] : memref<1x16x16xf32, #tpu.memory_space<vmem>>, vector<1x16x16xf32>
    %36 = vector.shape_cast %35 : vector<1x16x16xf32> to vector<16x16xf32>
    %37 = arith.truncf %34 : vector<16x32xf32> to vector<16x32xbf16>
    %c0_18 = arith.constant 0 : index
    %c0_19 = arith.constant 0 : index
    %c0_20 = arith.constant 0 : index
    %38 = vector.load %arg8[%c0_18, %c0_19, %c0_20] : memref<12x32x16xbf16, #tpu.memory_space<vmem>>, vector<1x32x16xbf16>
    %39 = vector.shape_cast %38 : vector<1x32x16xbf16> to vector<32x16xbf16>
    %cst_21 = arith.constant dense<0.000000e+00> : vector<16x16xf32>
    %40 = tpu.matmul %37, %39, %cst_21 {dimension_numbers = #tpu.dot_dimension_numbers<[1], [0], [0], [1], [0, 0, 1, 1], [], []>} : vector<16x32xbf16>, vector<32x16xbf16>, vector<16x16xf32> -> vector<16x16xf32>
    %c0_22 = arith.constant 0 : index
    %c0_23 = arith.constant 0 : index
    %c0_24 = arith.constant 0 : index
    %41 = vector.load %arg9[%c0_22, %c0_23, %c0_24] : memref<12x1x16xf32, #tpu.memory_space<vmem>>, vector<1x1x16xf32>
    %42 = vector.shape_cast %41 : vector<1x1x16xf32> to vector<1x16xf32>
    %43 = vector.broadcast %42 : vector<1x16xf32> to vector<16x16xf32>
    %44 = arith.addf %40, %43 : vector<16x16xf32>
    %c1 = arith.constant 1 : index
    %c0_25 = arith.constant 0 : index
    %c0_26 = arith.constant 0 : index
    %45 = vector.load %arg8[%c1, %c0_25, %c0_26] : memref<12x32x16xbf16, #tpu.memory_space<vmem>>, vector<1x32x16xbf16>
    %46 = vector.shape_cast %45 : vector<1x32x16xbf16> to vector<32x16xbf16>
    %cst_27 = arith.constant dense<0.000000e+00> : vector<16x16xf32>
    %47 = tpu.matmul %37, %46, %cst_27 {dimension_numbers = #tpu.dot_dimension_numbers<[1], [0], [0], [1], [0, 0, 1, 1], [], []>} : vector<16x32xbf16>, vector<32x16xbf16>, vector<16x16xf32> -> vector<16x16xf32>
    %c1_28 = arith.constant 1 : index
    %c0_29 = arith.constant 0 : index
    %c0_30 = arith.constant 0 : index
    %48 = vector.load %arg9[%c1_28, %c0_29, %c0_30] : memref<12x1x16xf32, #tpu.memory_space<vmem>>, vector<1x1x16xf32>
    %49 = vector.shape_cast %48 : vector<1x1x16xf32> to vector<1x16xf32>
    %50 = vector.broadcast %49 : vector<1x16xf32> to vector<16x16xf32>
    %51 = arith.addf %47, %50 : vector<16x16xf32>
    %c2 = arith.constant 2 : index
    %c0_31 = arith.constant 0 : index
    %c0_32 = arith.constant 0 : index
    %52 = vector.load %arg8[%c2, %c0_31, %c0_32] : memref<12x32x16xbf16, #tpu.memory_space<vmem>>, vector<1x32x16xbf16>
    %53 = vector.shape_cast %52 : vector<1x32x16xbf16> to vector<32x16xbf16>
    %cst_33 = arith.constant dense<0.000000e+00> : vector<16x16xf32>
    %54 = tpu.matmul %37, %53, %cst_33 {dimension_numbers = #tpu.dot_dimension_numbers<[1], [0], [0], [1], [0, 0, 1, 1], [], []>} : vector<16x32xbf16>, vector<32x16xbf16>, vector<16x16xf32> -> vector<16x16xf32>
    %c2_34 = arith.constant 2 : index
    %c0_35 = arith.constant 0 : index
    %c0_36 = arith.constant 0 : index
    %55 = vector.load %arg9[%c2_34, %c0_35, %c0_36] : memref<12x1x16xf32, #tpu.memory_space<vmem>>, vector<1x1x16xf32>
    %56 = vector.shape_cast %55 : vector<1x1x16xf32> to vector<1x16xf32>
    %57 = vector.broadcast %56 : vector<1x16xf32> to vector<16x16xf32>
    %58 = arith.addf %54, %57 : vector<16x16xf32>
    %59 = arith.truncf %44 : vector<16x16xf32> to vector<16x16xbf16>
    %60 = arith.truncf %51 : vector<16x16xf32> to vector<16x16xbf16>
    "tpu.trace_start"() <{level = 10 : i32, message = "qd,kd->qk"}> : () -> ()
    %cst_37 = arith.constant dense<0.000000e+00> : vector<16x16xf32>
    %61 = tpu.matmul %59, %60, %cst_37 {dimension_numbers = #tpu.dot_dimension_numbers<[1], [1], [0], [0], [0, 0, 1, 0], [], []>} : vector<16x16xbf16>, vector<16x16xbf16>, vector<16x16xf32> -> vector<16x16xf32>
    "tpu.trace_stop"() : () -> ()
    %cst_38 = arith.constant 2.500000e-01 : f32
    %62 = vector.broadcast %cst_38 : f32 to vector<16x16xf32>
    %63 = arith.mulf %61, %62 : vector<16x16xf32>
    %64 = arith.addf %63, %36 : vector<16x16xf32>
    %cst_39 = arith.constant dense<0xFF800000> : vector<16xf32>
    %65 = vector.multi_reduction <maximumf>, %64, %cst_39 [1] : vector<16x16xf32> to vector<16xf32>
    %66 = vector.shape_cast %65 : vector<16xf32> to vector<16x1xf32>
    %67 = vector.broadcast %66 : vector<16x1xf32> to vector<16x16xf32>
    %68 = arith.subf %64, %67 : vector<16x16xf32>
    %69 = math.exp %68 : vector<16x16xf32>
    %cst_40 = arith.constant dense<0.000000e+00> : vector<16xf32>
    %70 = vector.multi_reduction <add>, %69, %cst_40 [1] : vector<16x16xf32> to vector<16xf32>
    %71 = vector.shape_cast %70 : vector<16xf32> to vector<16x1xf32>
    %72 = tpu.reciprocal %71 {approx = true} : vector<16x1xf32> -> vector<16x1xf32>
    %73 = vector.broadcast %72 : vector<16x1xf32> to vector<16x16xf32>
    %74 = arith.mulf %69, %73 : vector<16x16xf32>
    %75 = arith.truncf %74 : vector<16x16xf32> to vector<16x16xbf16>
    %76 = arith.truncf %58 : vector<16x16xf32> to vector<16x16xbf16>
    %cst_41 = arith.constant dense<0.000000e+00> : vector<16x16xf32>
    %77 = tpu.matmul %75, %76, %cst_41 {dimension_numbers = #tpu.dot_dimension_numbers<[1], [0], [0], [1], [0, 0, 1, 1], [], []>} : vector<16x16xbf16>, vector<16x16xbf16>, vector<16x16xf32> -> vector<16x16xf32>
    %78 = arith.truncf %77 : vector<16x16xf32> to vector<16x16xbf16>
    %c0_42 = arith.constant 0 : index
    %c0_43 = arith.constant 0 : index
    %c0_44 = arith.constant 0 : index
    %79 = vector.load %arg10[%c0_42, %c0_43, %c0_44] : memref<4x16x32xbf16, #tpu.memory_space<vmem>>, vector<1x16x32xbf16>
    %80 = vector.shape_cast %79 : vector<1x16x32xbf16> to vector<16x32xbf16>
    %cst_45 = arith.constant dense<0.000000e+00> : vector<16x32xf32>
    %81 = tpu.matmul %78, %80, %cst_45 {dimension_numbers = #tpu.dot_dimension_numbers<[1], [0], [0], [1], [0, 0, 1, 1], [], []>} : vector<16x16xbf16>, vector<16x32xbf16>, vector<16x32xf32> -> vector<16x32xf32>
    %c3 = arith.constant 3 : index
    %c0_46 = arith.constant 0 : index
    %c0_47 = arith.constant 0 : index
    %82 = vector.load %arg8[%c3, %c0_46, %c0_47] : memref<12x32x16xbf16, #tpu.memory_space<vmem>>, vector<1x32x16xbf16>
    %83 = vector.shape_cast %82 : vector<1x32x16xbf16> to vector<32x16xbf16>
    %cst_48 = arith.constant dense<0.000000e+00> : vector<16x16xf32>
    %84 = tpu.matmul %37, %83, %cst_48 {dimension_numbers = #tpu.dot_dimension_numbers<[1], [0], [0], [1], [0, 0, 1, 1], [], []>} : vector<16x32xbf16>, vector<32x16xbf16>, vector<16x16xf32> -> vector<16x16xf32>
    %c3_49 = arith.constant 3 : index
    %c0_50 = arith.constant 0 : index
    %c0_51 = arith.constant 0 : index
    %85 = vector.load %arg9[%c3_49, %c0_50, %c0_51] : memref<12x1x16xf32, #tpu.memory_space<vmem>>, vector<1x1x16xf32>
    %86 = vector.shape_cast %85 : vector<1x1x16xf32> to vector<1x16xf32>
    %87 = vector.broadcast %86 : vector<1x16xf32> to vector<16x16xf32>
    %88 = arith.addf %84, %87 : vector<16x16xf32>
    %c4 = arith.constant 4 : index
    %c0_52 = arith.constant 0 : index
    %c0_53 = arith.constant 0 : index
    %89 = vector.load %arg8[%c4, %c0_52, %c0_53] : memref<12x32x16xbf16, #tpu.memory_space<vmem>>, vector<1x32x16xbf16>
    %90 = vector.shape_cast %89 : vector<1x32x16xbf16> to vector<32x16xbf16>
    %cst_54 = arith.constant dense<0.000000e+00> : vector<16x16xf32>
    %91 = tpu.matmul %37, %90, %cst_54 {dimension_numbers = #tpu.dot_dimension_numbers<[1], [0], [0], [1], [0, 0, 1, 1], [], []>} : vector<16x32xbf16>, vector<32x16xbf16>, vector<16x16xf32> -> vector<16x16xf32>
    %c4_55 = arith.constant 4 : index
    %c0_56 = arith.constant 0 : index
    %c0_57 = arith.constant 0 : index
    %92 = vector.load %arg9[%c4_55, %c0_56, %c0_57] : memref<12x1x16xf32, #tpu.memory_space<vmem>>, vector<1x1x16xf32>
    %93 = vector.shape_cast %92 : vector<1x1x16xf32> to vector<1x16xf32>
    %94 = vector.broadcast %93 : vector<1x16xf32> to vector<16x16xf32>
    %95 = arith.addf %91, %94 : vector<16x16xf32>
    %c5 = arith.constant 5 : index
    %c0_58 = arith.constant 0 : index
    %c0_59 = arith.constant 0 : index
    %96 = vector.load %arg8[%c5, %c0_58, %c0_59] : memref<12x32x16xbf16, #tpu.memory_space<vmem>>, vector<1x32x16xbf16>
    %97 = vector.shape_cast %96 : vector<1x32x16xbf16> to vector<32x16xbf16>
    %cst_60 = arith.constant dense<0.000000e+00> : vector<16x16xf32>
    %98 = tpu.matmul %37, %97, %cst_60 {dimension_numbers = #tpu.dot_dimension_numbers<[1], [0], [0], [1], [0, 0, 1, 1], [], []>} : vector<16x32xbf16>, vector<32x16xbf16>, vector<16x16xf32> -> vector<16x16xf32>
    %c5_61 = arith.constant 5 : index
    %c0_62 = arith.constant 0 : index
    %c0_63 = arith.constant 0 : index
    %99 = vector.load %arg9[%c5_61, %c0_62, %c0_63] : memref<12x1x16xf32, #tpu.memory_space<vmem>>, vector<1x1x16xf32>
    %100 = vector.shape_cast %99 : vector<1x1x16xf32> to vector<1x16xf32>
    %101 = vector.broadcast %100 : vector<1x16xf32> to vector<16x16xf32>
    %102 = arith.addf %98, %101 : vector<16x16xf32>
    %103 = arith.truncf %88 : vector<16x16xf32> to vector<16x16xbf16>
    %104 = arith.truncf %95 : vector<16x16xf32> to vector<16x16xbf16>
    "tpu.trace_start"() <{level = 10 : i32, message = "qd,kd->qk"}> : () -> ()
    %cst_64 = arith.constant dense<0.000000e+00> : vector<16x16xf32>
    %105 = tpu.matmul %103, %104, %cst_64 {dimension_numbers = #tpu.dot_dimension_numbers<[1], [1], [0], [0], [0, 0, 1, 0], [], []>} : vector<16x16xbf16>, vector<16x16xbf16>, vector<16x16xf32> -> vector<16x16xf32>
    "tpu.trace_stop"() : () -> ()
    %cst_65 = arith.constant 2.500000e-01 : f32
    %106 = vector.broadcast %cst_65 : f32 to vector<16x16xf32>
    %107 = arith.mulf %105, %106 : vector<16x16xf32>
    %108 = arith.addf %107, %36 : vector<16x16xf32>
    %cst_66 = arith.constant dense<0xFF800000> : vector<16xf32>
    %109 = vector.multi_reduction <maximumf>, %108, %cst_66 [1] : vector<16x16xf32> to vector<16xf32>
    %110 = vector.shape_cast %109 : vector<16xf32> to vector<16x1xf32>
    %111 = vector.broadcast %110 : vector<16x1xf32> to vector<16x16xf32>
    %112 = arith.subf %108, %111 : vector<16x16xf32>
    %113 = math.exp %112 : vector<16x16xf32>
    %cst_67 = arith.constant dense<0.000000e+00> : vector<16xf32>
    %114 = vector.multi_reduction <add>, %113, %cst_67 [1] : vector<16x16xf32> to vector<16xf32>
    %115 = vector.shape_cast %114 : vector<16xf32> to vector<16x1xf32>
    %116 = tpu.reciprocal %115 {approx = true} : vector<16x1xf32> -> vector<16x1xf32>
    %117 = vector.broadcast %116 : vector<16x1xf32> to vector<16x16xf32>
    %118 = arith.mulf %113, %117 : vector<16x16xf32>
    %119 = arith.truncf %118 : vector<16x16xf32> to vector<16x16xbf16>
    %120 = arith.truncf %102 : vector<16x16xf32> to vector<16x16xbf16>
    %cst_68 = arith.constant dense<0.000000e+00> : vector<16x16xf32>
    %121 = tpu.matmul %119, %120, %cst_68 {dimension_numbers = #tpu.dot_dimension_numbers<[1], [0], [0], [1], [0, 0, 1, 1], [], []>} : vector<16x16xbf16>, vector<16x16xbf16>, vector<16x16xf32> -> vector<16x16xf32>
    %122 = arith.truncf %121 : vector<16x16xf32> to vector<16x16xbf16>
    %c1_69 = arith.constant 1 : index
    %c0_70 = arith.constant 0 : index
    %c0_71 = arith.constant 0 : index
    %123 = vector.load %arg10[%c1_69, %c0_70, %c0_71] : memref<4x16x32xbf16, #tpu.memory_space<vmem>>, vector<1x16x32xbf16>
    %124 = vector.shape_cast %123 : vector<1x16x32xbf16> to vector<16x32xbf16>
    %cst_72 = arith.constant dense<0.000000e+00> : vector<16x32xf32>
    %125 = tpu.matmul %122, %124, %cst_72 {dimension_numbers = #tpu.dot_dimension_numbers<[1], [0], [0], [1], [0, 0, 1, 1], [], []>} : vector<16x16xbf16>, vector<16x32xbf16>, vector<16x32xf32> -> vector<16x32xf32>
    %126 = arith.addf %81, %125 : vector<16x32xf32>
    %127 = arith.addf %34, %126 : vector<16x32xf32>
    %c0_73 = arith.constant 0 : index
    %c0_74 = arith.constant 0 : index
    %c0_75 = arith.constant 0 : index
    %128 = vector.load %arg11[%c0_73, %c0_74, %c0_75] : memref<2x1x32xf32, #tpu.memory_space<vmem>>, vector<1x1x32xf32>
    %129 = vector.shape_cast %128 : vector<1x1x32xf32> to vector<1x32xf32>
    %130 = vector.broadcast %129 : vector<1x32xf32> to vector<16x32xf32>
    %131 = arith.addf %127, %130 : vector<16x32xf32>
    %c0_76 = arith.constant 0 : index
    %c0_77 = arith.constant 0 : index
    %c0_78 = arith.constant 0 : index
    %132 = vector.load %arg12[%c0_76, %c0_77, %c0_78] : memref<2x1x32xf32, #tpu.memory_space<vmem>>, vector<1x1x32xf32>
    %133 = vector.shape_cast %132 : vector<1x1x32xf32> to vector<1x32xf32>
    %c0_79 = arith.constant 0 : index
    %c0_80 = arith.constant 0 : index
    %c0_81 = arith.constant 0 : index
    %134 = vector.load %arg13[%c0_79, %c0_80, %c0_81] : memref<2x1x32xf32, #tpu.memory_space<vmem>>, vector<1x1x32xf32>
    %135 = vector.shape_cast %134 : vector<1x1x32xf32> to vector<1x32xf32>
    %cst_82 = arith.constant dense<0.000000e+00> : vector<16xf32>
    %136 = vector.multi_reduction <add>, %131, %cst_82 [1] : vector<16x32xf32> to vector<16xf32>
    %137 = vector.shape_cast %136 : vector<16xf32> to vector<16x1xf32>
    %cst_83 = arith.constant 3.200000e+01 : f32
    %138 = vector.broadcast %cst_83 : f32 to vector<16x1xf32>
    %139 = arith.divf %137, %138 : vector<16x1xf32>
    %140 = vector.broadcast %139 : vector<16x1xf32> to vector<16x32xf32>
    %141 = arith.subf %131, %140 : vector<16x32xf32>
    %142 = arith.mulf %141, %141 : vector<16x32xf32>
    %cst_84 = arith.constant dense<0.000000e+00> : vector<16xf32>
    %143 = vector.multi_reduction <add>, %142, %cst_84 [1] : vector<16x32xf32> to vector<16xf32>
    %144 = vector.shape_cast %143 : vector<16xf32> to vector<16x1xf32>
    %cst_85 = arith.constant 3.200000e+01 : f32
    %145 = vector.broadcast %cst_85 : f32 to vector<16x1xf32>
    %146 = arith.divf %144, %145 : vector<16x1xf32>
    %147 = vector.broadcast %139 : vector<16x1xf32> to vector<16x32xf32>
    %148 = arith.subf %131, %147 : vector<16x32xf32>
    %cst_86 = arith.constant 9.99999996E-13 : f32
    %149 = vector.broadcast %cst_86 : f32 to vector<16x1xf32>
    %150 = arith.addf %146, %149 : vector<16x1xf32>
    %151 = math.rsqrt %150 : vector<16x1xf32>
    %152 = vector.broadcast %151 : vector<16x1xf32> to vector<16x32xf32>
    %153 = arith.mulf %148, %152 : vector<16x32xf32>
    %154 = vector.broadcast %133 : vector<1x32xf32> to vector<16x32xf32>
    %155 = arith.mulf %153, %154 : vector<16x32xf32>
    %156 = vector.broadcast %135 : vector<1x32xf32> to vector<16x32xf32>
    %157 = arith.addf %155, %156 : vector<16x32xf32>
    %158 = arith.truncf %157 : vector<16x32xf32> to vector<16x32xbf16>
    %c0_87 = arith.constant 0 : index
    %c0_88 = arith.constant 0 : index
    %c0_89 = arith.constant 0 : index
    %159 = vector.load %arg14[%c0_87, %c0_88, %c0_89] : memref<2x32x64xbf16, #tpu.memory_space<vmem>>, vector<1x32x64xbf16>
    %160 = vector.shape_cast %159 : vector<1x32x64xbf16> to vector<32x64xbf16>
    %cst_90 = arith.constant dense<0.000000e+00> : vector<16x64xf32>
    %161 = tpu.matmul %158, %160, %cst_90 {dimension_numbers = #tpu.dot_dimension_numbers<[1], [0], [0], [1], [0, 0, 1, 1], [], []>} : vector<16x32xbf16>, vector<32x64xbf16>, vector<16x64xf32> -> vector<16x64xf32>
    %c0_91 = arith.constant 0 : index
    %c0_92 = arith.constant 0 : index
    %c0_93 = arith.constant 0 : index
    %162 = vector.load %arg15[%c0_91, %c0_92, %c0_93] : memref<2x1x64xf32, #tpu.memory_space<vmem>>, vector<1x1x64xf32>
    %163 = vector.shape_cast %162 : vector<1x1x64xf32> to vector<1x64xf32>
    %164 = vector.broadcast %163 : vector<1x64xf32> to vector<16x64xf32>
    %165 = arith.addf %161, %164 : vector<16x64xf32>
    %cst_94 = arith.constant 5.000000e-01 : f32
    %166 = vector.broadcast %cst_94 : f32 to vector<16x64xf32>
    %167 = arith.mulf %166, %165 : vector<16x64xf32>
    %cst_95 = arith.constant 4.471500e-02 : f32
    %168 = vector.broadcast %cst_95 : f32 to vector<16x64xf32>
    %169 = arith.mulf %168, %165 : vector<16x64xf32>
    %170 = arith.mulf %169, %165 : vector<16x64xf32>
    %171 = arith.mulf %170, %165 : vector<16x64xf32>
    %172 = arith.addf %165, %171 : vector<16x64xf32>
    %cst_96 = arith.constant 0.797884583 : f32
    %173 = vector.broadcast %cst_96 : f32 to vector<16x64xf32>
    %174 = arith.mulf %173, %172 : vector<16x64xf32>
    %175 = math.tanh %174 : vector<16x64xf32>
    %cst_97 = arith.constant 1.000000e+00 : f32
    %176 = vector.broadcast %cst_97 : f32 to vector<16x64xf32>
    %177 = arith.addf %176, %175 : vector<16x64xf32>
    %178 = arith.mulf %167, %177 : vector<16x64xf32>
    %179 = arith.truncf %178 : vector<16x64xf32> to vector<16x64xbf16>
    %c0_98 = arith.constant 0 : index
    %c0_99 = arith.constant 0 : index
    %c0_100 = arith.constant 0 : index
    %180 = vector.load %arg16[%c0_98, %c0_99, %c0_100] : memref<2x64x32xbf16, #tpu.memory_space<vmem>>, vector<1x64x32xbf16>
    %181 = vector.shape_cast %180 : vector<1x64x32xbf16> to vector<64x32xbf16>
    %cst_101 = arith.constant dense<0.000000e+00> : vector<16x32xf32>
    %182 = tpu.matmul %179, %181, %cst_101 {dimension_numbers = #tpu.dot_dimension_numbers<[1], [0], [0], [1], [0, 0, 1, 1], [], []>} : vector<16x64xbf16>, vector<64x32xbf16>, vector<16x32xf32> -> vector<16x32xf32>
    %c0_102 = arith.constant 0 : index
    %c0_103 = arith.constant 0 : index
    %c0_104 = arith.constant 0 : index
    %183 = vector.load %arg17[%c0_102, %c0_103, %c0_104] : memref<2x1x32xf32, #tpu.memory_space<vmem>>, vector<1x1x32xf32>
    %184 = vector.shape_cast %183 : vector<1x1x32xf32> to vector<1x32xf32>
    %185 = vector.broadcast %184 : vector<1x32xf32> to vector<16x32xf32>
    %186 = arith.addf %182, %185 : vector<16x32xf32>
    %187 = arith.addf %157, %186 : vector<16x32xf32>
    %c0_105 = arith.constant 0 : index
    %c0_106 = arith.constant 0 : index
    %c0_107 = arith.constant 0 : index
    %188 = vector.load %arg18[%c0_105, %c0_106, %c0_107] : memref<2x1x32xf32, #tpu.memory_space<vmem>>, vector<1x1x32xf32>
    %189 = vector.shape_cast %188 : vector<1x1x32xf32> to vector<1x32xf32>
    %c0_108 = arith.constant 0 : index
    %c0_109 = arith.constant 0 : index
    %c0_110 = arith.constant 0 : index
    %190 = vector.load %arg19[%c0_108, %c0_109, %c0_110] : memref<2x1x32xf32, #tpu.memory_space<vmem>>, vector<1x1x32xf32>
    %191 = vector.shape_cast %190 : vector<1x1x32xf32> to vector<1x32xf32>
    %cst_111 = arith.constant dense<0.000000e+00> : vector<16xf32>
    %192 = vector.multi_reduction <add>, %187, %cst_111 [1] : vector<16x32xf32> to vector<16xf32>
    %193 = vector.shape_cast %192 : vector<16xf32> to vector<16x1xf32>
    %cst_112 = arith.constant 3.200000e+01 : f32
    %194 = vector.broadcast %cst_112 : f32 to vector<16x1xf32>
    %195 = arith.divf %193, %194 : vector<16x1xf32>
    %196 = vector.broadcast %195 : vector<16x1xf32> to vector<16x32xf32>
    %197 = arith.subf %187, %196 : vector<16x32xf32>
    %198 = arith.mulf %197, %197 : vector<16x32xf32>
    %cst_113 = arith.constant dense<0.000000e+00> : vector<16xf32>
    %199 = vector.multi_reduction <add>, %198, %cst_113 [1] : vector<16x32xf32> to vector<16xf32>
    %200 = vector.shape_cast %199 : vector<16xf32> to vector<16x1xf32>
    %cst_114 = arith.constant 3.200000e+01 : f32
    %201 = vector.broadcast %cst_114 : f32 to vector<16x1xf32>
    %202 = arith.divf %200, %201 : vector<16x1xf32>
    %203 = vector.broadcast %195 : vector<16x1xf32> to vector<16x32xf32>
    %204 = arith.subf %187, %203 : vector<16x32xf32>
    %cst_115 = arith.constant 9.99999996E-13 : f32
    %205 = vector.broadcast %cst_115 : f32 to vector<16x1xf32>
    %206 = arith.addf %202, %205 : vector<16x1xf32>
    %207 = math.rsqrt %206 : vector<16x1xf32>
    %208 = vector.broadcast %207 : vector<16x1xf32> to vector<16x32xf32>
    %209 = arith.mulf %204, %208 : vector<16x32xf32>
    %210 = vector.broadcast %189 : vector<1x32xf32> to vector<16x32xf32>
    %211 = arith.mulf %209, %210 : vector<16x32xf32>
    %212 = vector.broadcast %191 : vector<1x32xf32> to vector<16x32xf32>
    %213 = arith.addf %211, %212 : vector<16x32xf32>
    %214 = arith.truncf %213 : vector<16x32xf32> to vector<16x32xbf16>
    %c6 = arith.constant 6 : index
    %c0_116 = arith.constant 0 : index
    %c0_117 = arith.constant 0 : index
    %215 = vector.load %arg8[%c6, %c0_116, %c0_117] : memref<12x32x16xbf16, #tpu.memory_space<vmem>>, vector<1x32x16xbf16>
    %216 = vector.shape_cast %215 : vector<1x32x16xbf16> to vector<32x16xbf16>
    %cst_118 = arith.constant dense<0.000000e+00> : vector<16x16xf32>
    %217 = tpu.matmul %214, %216, %cst_118 {dimension_numbers = #tpu.dot_dimension_numbers<[1], [0], [0], [1], [0, 0, 1, 1], [], []>} : vector<16x32xbf16>, vector<32x16xbf16>, vector<16x16xf32> -> vector<16x16xf32>
    %c6_119 = arith.constant 6 : index
    %c0_120 = arith.constant 0 : index
    %c0_121 = arith.constant 0 : index
    %218 = vector.load %arg9[%c6_119, %c0_120, %c0_121] : memref<12x1x16xf32, #tpu.memory_space<vmem>>, vector<1x1x16xf32>
    %219 = vector.shape_cast %218 : vector<1x1x16xf32> to vector<1x16xf32>
    %220 = vector.broadcast %219 : vector<1x16xf32> to vector<16x16xf32>
    %221 = arith.addf %217, %220 : vector<16x16xf32>
    %c7 = arith.constant 7 : index
    %c0_122 = arith.constant 0 : index
    %c0_123 = arith.constant 0 : index
    %222 = vector.load %arg8[%c7, %c0_122, %c0_123] : memref<12x32x16xbf16, #tpu.memory_space<vmem>>, vector<1x32x16xbf16>
    %223 = vector.shape_cast %222 : vector<1x32x16xbf16> to vector<32x16xbf16>
    %cst_124 = arith.constant dense<0.000000e+00> : vector<16x16xf32>
    %224 = tpu.matmul %214, %223, %cst_124 {dimension_numbers = #tpu.dot_dimension_numbers<[1], [0], [0], [1], [0, 0, 1, 1], [], []>} : vector<16x32xbf16>, vector<32x16xbf16>, vector<16x16xf32> -> vector<16x16xf32>
    %c7_125 = arith.constant 7 : index
    %c0_126 = arith.constant 0 : index
    %c0_127 = arith.constant 0 : index
    %225 = vector.load %arg9[%c7_125, %c0_126, %c0_127] : memref<12x1x16xf32, #tpu.memory_space<vmem>>, vector<1x1x16xf32>
    %226 = vector.shape_cast %225 : vector<1x1x16xf32> to vector<1x16xf32>
    %227 = vector.broadcast %226 : vector<1x16xf32> to vector<16x16xf32>
    %228 = arith.addf %224, %227 : vector<16x16xf32>
    %c8 = arith.constant 8 : index
    %c0_128 = arith.constant 0 : index
    %c0_129 = arith.constant 0 : index
    %229 = vector.load %arg8[%c8, %c0_128, %c0_129] : memref<12x32x16xbf16, #tpu.memory_space<vmem>>, vector<1x32x16xbf16>
    %230 = vector.shape_cast %229 : vector<1x32x16xbf16> to vector<32x16xbf16>
    %cst_130 = arith.constant dense<0.000000e+00> : vector<16x16xf32>
    %231 = tpu.matmul %214, %230, %cst_130 {dimension_numbers = #tpu.dot_dimension_numbers<[1], [0], [0], [1], [0, 0, 1, 1], [], []>} : vector<16x32xbf16>, vector<32x16xbf16>, vector<16x16xf32> -> vector<16x16xf32>
    %c8_131 = arith.constant 8 : index
    %c0_132 = arith.constant 0 : index
    %c0_133 = arith.constant 0 : index
    %232 = vector.load %arg9[%c8_131, %c0_132, %c0_133] : memref<12x1x16xf32, #tpu.memory_space<vmem>>, vector<1x1x16xf32>
    %233 = vector.shape_cast %232 : vector<1x1x16xf32> to vector<1x16xf32>
    %234 = vector.broadcast %233 : vector<1x16xf32> to vector<16x16xf32>
    %235 = arith.addf %231, %234 : vector<16x16xf32>
    %236 = arith.truncf %221 : vector<16x16xf32> to vector<16x16xbf16>
    %237 = arith.truncf %228 : vector<16x16xf32> to vector<16x16xbf16>
    "tpu.trace_start"() <{level = 10 : i32, message = "qd,kd->qk"}> : () -> ()
    %cst_134 = arith.constant dense<0.000000e+00> : vector<16x16xf32>
    %238 = tpu.matmul %236, %237, %cst_134 {dimension_numbers = #tpu.dot_dimension_numbers<[1], [1], [0], [0], [0, 0, 1, 0], [], []>} : vector<16x16xbf16>, vector<16x16xbf16>, vector<16x16xf32> -> vector<16x16xf32>
    "tpu.trace_stop"() : () -> ()
    %cst_135 = arith.constant 2.500000e-01 : f32
    %239 = vector.broadcast %cst_135 : f32 to vector<16x16xf32>
    %240 = arith.mulf %238, %239 : vector<16x16xf32>
    %241 = arith.addf %240, %36 : vector<16x16xf32>
    %cst_136 = arith.constant dense<0xFF800000> : vector<16xf32>
    %242 = vector.multi_reduction <maximumf>, %241, %cst_136 [1] : vector<16x16xf32> to vector<16xf32>
    %243 = vector.shape_cast %242 : vector<16xf32> to vector<16x1xf32>
    %244 = vector.broadcast %243 : vector<16x1xf32> to vector<16x16xf32>
    %245 = arith.subf %241, %244 : vector<16x16xf32>
    %246 = math.exp %245 : vector<16x16xf32>
    %cst_137 = arith.constant dense<0.000000e+00> : vector<16xf32>
    %247 = vector.multi_reduction <add>, %246, %cst_137 [1] : vector<16x16xf32> to vector<16xf32>
    %248 = vector.shape_cast %247 : vector<16xf32> to vector<16x1xf32>
    %249 = tpu.reciprocal %248 {approx = true} : vector<16x1xf32> -> vector<16x1xf32>
    %250 = vector.broadcast %249 : vector<16x1xf32> to vector<16x16xf32>
    %251 = arith.mulf %246, %250 : vector<16x16xf32>
    %252 = arith.truncf %251 : vector<16x16xf32> to vector<16x16xbf16>
    %253 = arith.truncf %235 : vector<16x16xf32> to vector<16x16xbf16>
    %cst_138 = arith.constant dense<0.000000e+00> : vector<16x16xf32>
    %254 = tpu.matmul %252, %253, %cst_138 {dimension_numbers = #tpu.dot_dimension_numbers<[1], [0], [0], [1], [0, 0, 1, 1], [], []>} : vector<16x16xbf16>, vector<16x16xbf16>, vector<16x16xf32> -> vector<16x16xf32>
    %255 = arith.truncf %254 : vector<16x16xf32> to vector<16x16xbf16>
    %c2_139 = arith.constant 2 : index
    %c0_140 = arith.constant 0 : index
    %c0_141 = arith.constant 0 : index
    %256 = vector.load %arg10[%c2_139, %c0_140, %c0_141] : memref<4x16x32xbf16, #tpu.memory_space<vmem>>, vector<1x16x32xbf16>
    %257 = vector.shape_cast %256 : vector<1x16x32xbf16> to vector<16x32xbf16>
    %cst_142 = arith.constant dense<0.000000e+00> : vector<16x32xf32>
    %258 = tpu.matmul %255, %257, %cst_142 {dimension_numbers = #tpu.dot_dimension_numbers<[1], [0], [0], [1], [0, 0, 1, 1], [], []>} : vector<16x16xbf16>, vector<16x32xbf16>, vector<16x32xf32> -> vector<16x32xf32>
    %c9 = arith.constant 9 : index
    %c0_143 = arith.constant 0 : index
    %c0_144 = arith.constant 0 : index
    %259 = vector.load %arg8[%c9, %c0_143, %c0_144] : memref<12x32x16xbf16, #tpu.memory_space<vmem>>, vector<1x32x16xbf16>
    %260 = vector.shape_cast %259 : vector<1x32x16xbf16> to vector<32x16xbf16>
    %cst_145 = arith.constant dense<0.000000e+00> : vector<16x16xf32>
    %261 = tpu.matmul %214, %260, %cst_145 {dimension_numbers = #tpu.dot_dimension_numbers<[1], [0], [0], [1], [0, 0, 1, 1], [], []>} : vector<16x32xbf16>, vector<32x16xbf16>, vector<16x16xf32> -> vector<16x16xf32>
    %c9_146 = arith.constant 9 : index
    %c0_147 = arith.constant 0 : index
    %c0_148 = arith.constant 0 : index
    %262 = vector.load %arg9[%c9_146, %c0_147, %c0_148] : memref<12x1x16xf32, #tpu.memory_space<vmem>>, vector<1x1x16xf32>
    %263 = vector.shape_cast %262 : vector<1x1x16xf32> to vector<1x16xf32>
    %264 = vector.broadcast %263 : vector<1x16xf32> to vector<16x16xf32>
    %265 = arith.addf %261, %264 : vector<16x16xf32>
    %c10 = arith.constant 10 : index
    %c0_149 = arith.constant 0 : index
    %c0_150 = arith.constant 0 : index
    %266 = vector.load %arg8[%c10, %c0_149, %c0_150] : memref<12x32x16xbf16, #tpu.memory_space<vmem>>, vector<1x32x16xbf16>
    %267 = vector.shape_cast %266 : vector<1x32x16xbf16> to vector<32x16xbf16>
    %cst_151 = arith.constant dense<0.000000e+00> : vector<16x16xf32>
    %268 = tpu.matmul %214, %267, %cst_151 {dimension_numbers = #tpu.dot_dimension_numbers<[1], [0], [0], [1], [0, 0, 1, 1], [], []>} : vector<16x32xbf16>, vector<32x16xbf16>, vector<16x16xf32> -> vector<16x16xf32>
    %c10_152 = arith.constant 10 : index
    %c0_153 = arith.constant 0 : index
    %c0_154 = arith.constant 0 : index
    %269 = vector.load %arg9[%c10_152, %c0_153, %c0_154] : memref<12x1x16xf32, #tpu.memory_space<vmem>>, vector<1x1x16xf32>
    %270 = vector.shape_cast %269 : vector<1x1x16xf32> to vector<1x16xf32>
    %271 = vector.broadcast %270 : vector<1x16xf32> to vector<16x16xf32>
    %272 = arith.addf %268, %271 : vector<16x16xf32>
    %c11 = arith.constant 11 : index
    %c0_155 = arith.constant 0 : index
    %c0_156 = arith.constant 0 : index
    %273 = vector.load %arg8[%c11, %c0_155, %c0_156] : memref<12x32x16xbf16, #tpu.memory_space<vmem>>, vector<1x32x16xbf16>
    %274 = vector.shape_cast %273 : vector<1x32x16xbf16> to vector<32x16xbf16>
    %cst_157 = arith.constant dense<0.000000e+00> : vector<16x16xf32>
    %275 = tpu.matmul %214, %274, %cst_157 {dimension_numbers = #tpu.dot_dimension_numbers<[1], [0], [0], [1], [0, 0, 1, 1], [], []>} : vector<16x32xbf16>, vector<32x16xbf16>, vector<16x16xf32> -> vector<16x16xf32>
    %c11_158 = arith.constant 11 : index
    %c0_159 = arith.constant 0 : index
    %c0_160 = arith.constant 0 : index
    %276 = vector.load %arg9[%c11_158, %c0_159, %c0_160] : memref<12x1x16xf32, #tpu.memory_space<vmem>>, vector<1x1x16xf32>
    %277 = vector.shape_cast %276 : vector<1x1x16xf32> to vector<1x16xf32>
    %278 = vector.broadcast %277 : vector<1x16xf32> to vector<16x16xf32>
    %279 = arith.addf %275, %278 : vector<16x16xf32>
    %280 = arith.truncf %265 : vector<16x16xf32> to vector<16x16xbf16>
    %281 = arith.truncf %272 : vector<16x16xf32> to vector<16x16xbf16>
    "tpu.trace_start"() <{level = 10 : i32, message = "qd,kd->qk"}> : () -> ()
    %cst_161 = arith.constant dense<0.000000e+00> : vector<16x16xf32>
    %282 = tpu.matmul %280, %281, %cst_161 {dimension_numbers = #tpu.dot_dimension_numbers<[1], [1], [0], [0], [0, 0, 1, 0], [], []>} : vector<16x16xbf16>, vector<16x16xbf16>, vector<16x16xf32> -> vector<16x16xf32>
    "tpu.trace_stop"() : () -> ()
    %cst_162 = arith.constant 2.500000e-01 : f32
    %283 = vector.broadcast %cst_162 : f32 to vector<16x16xf32>
    %284 = arith.mulf %282, %283 : vector<16x16xf32>
    %285 = arith.addf %284, %36 : vector<16x16xf32>
    %cst_163 = arith.constant dense<0xFF800000> : vector<16xf32>
    %286 = vector.multi_reduction <maximumf>, %285, %cst_163 [1] : vector<16x16xf32> to vector<16xf32>
    %287 = vector.shape_cast %286 : vector<16xf32> to vector<16x1xf32>
    %288 = vector.broadcast %287 : vector<16x1xf32> to vector<16x16xf32>
    %289 = arith.subf %285, %288 : vector<16x16xf32>
    %290 = math.exp %289 : vector<16x16xf32>
    %cst_164 = arith.constant dense<0.000000e+00> : vector<16xf32>
    %291 = vector.multi_reduction <add>, %290, %cst_164 [1] : vector<16x16xf32> to vector<16xf32>
    %292 = vector.shape_cast %291 : vector<16xf32> to vector<16x1xf32>
    %293 = tpu.reciprocal %292 {approx = true} : vector<16x1xf32> -> vector<16x1xf32>
    %294 = vector.broadcast %293 : vector<16x1xf32> to vector<16x16xf32>
    %295 = arith.mulf %290, %294 : vector<16x16xf32>
    %296 = arith.truncf %295 : vector<16x16xf32> to vector<16x16xbf16>
    %297 = arith.truncf %279 : vector<16x16xf32> to vector<16x16xbf16>
    %cst_165 = arith.constant dense<0.000000e+00> : vector<16x16xf32>
    %298 = tpu.matmul %296, %297, %cst_165 {dimension_numbers = #tpu.dot_dimension_numbers<[1], [0], [0], [1], [0, 0, 1, 1], [], []>} : vector<16x16xbf16>, vector<16x16xbf16>, vector<16x16xf32> -> vector<16x16xf32>
    %299 = arith.truncf %298 : vector<16x16xf32> to vector<16x16xbf16>
    %c3_166 = arith.constant 3 : index
    %c0_167 = arith.constant 0 : index
    %c0_168 = arith.constant 0 : index
    %300 = vector.load %arg10[%c3_166, %c0_167, %c0_168] : memref<4x16x32xbf16, #tpu.memory_space<vmem>>, vector<1x16x32xbf16>
    %301 = vector.shape_cast %300 : vector<1x16x32xbf16> to vector<16x32xbf16>
    %cst_169 = arith.constant dense<0.000000e+00> : vector<16x32xf32>
    %302 = tpu.matmul %299, %301, %cst_169 {dimension_numbers = #tpu.dot_dimension_numbers<[1], [0], [0], [1], [0, 0, 1, 1], [], []>} : vector<16x16xbf16>, vector<16x32xbf16>, vector<16x32xf32> -> vector<16x32xf32>
    %303 = arith.addf %258, %302 : vector<16x32xf32>
    %304 = arith.addf %213, %303 : vector<16x32xf32>
    %c1_170 = arith.constant 1 : index
    %c0_171 = arith.constant 0 : index
    %c0_172 = arith.constant 0 : index
    %305 = vector.load %arg11[%c1_170, %c0_171, %c0_172] : memref<2x1x32xf32, #tpu.memory_space<vmem>>, vector<1x1x32xf32>
    %306 = vector.shape_cast %305 : vector<1x1x32xf32> to vector<1x32xf32>
    %307 = vector.broadcast %306 : vector<1x32xf32> to vector<16x32xf32>
    %308 = arith.addf %304, %307 : vector<16x32xf32>
    %c1_173 = arith.constant 1 : index
    %c0_174 = arith.constant 0 : index
    %c0_175 = arith.constant 0 : index
    %309 = vector.load %arg12[%c1_173, %c0_174, %c0_175] : memref<2x1x32xf32, #tpu.memory_space<vmem>>, vector<1x1x32xf32>
    %310 = vector.shape_cast %309 : vector<1x1x32xf32> to vector<1x32xf32>
    %c1_176 = arith.constant 1 : index
    %c0_177 = arith.constant 0 : index
    %c0_178 = arith.constant 0 : index
    %311 = vector.load %arg13[%c1_176, %c0_177, %c0_178] : memref<2x1x32xf32, #tpu.memory_space<vmem>>, vector<1x1x32xf32>
    %312 = vector.shape_cast %311 : vector<1x1x32xf32> to vector<1x32xf32>
    %cst_179 = arith.constant dense<0.000000e+00> : vector<16xf32>
    %313 = vector.multi_reduction <add>, %308, %cst_179 [1] : vector<16x32xf32> to vector<16xf32>
    %314 = vector.shape_cast %313 : vector<16xf32> to vector<16x1xf32>
    %cst_180 = arith.constant 3.200000e+01 : f32
    %315 = vector.broadcast %cst_180 : f32 to vector<16x1xf32>
    %316 = arith.divf %314, %315 : vector<16x1xf32>
    %317 = vector.broadcast %316 : vector<16x1xf32> to vector<16x32xf32>
    %318 = arith.subf %308, %317 : vector<16x32xf32>
    %319 = arith.mulf %318, %318 : vector<16x32xf32>
    %cst_181 = arith.constant dense<0.000000e+00> : vector<16xf32>
    %320 = vector.multi_reduction <add>, %319, %cst_181 [1] : vector<16x32xf32> to vector<16xf32>
    %321 = vector.shape_cast %320 : vector<16xf32> to vector<16x1xf32>
    %cst_182 = arith.constant 3.200000e+01 : f32
    %322 = vector.broadcast %cst_182 : f32 to vector<16x1xf32>
    %323 = arith.divf %321, %322 : vector<16x1xf32>
    %324 = vector.broadcast %316 : vector<16x1xf32> to vector<16x32xf32>
    %325 = arith.subf %308, %324 : vector<16x32xf32>
    %cst_183 = arith.constant 9.99999996E-13 : f32
    %326 = vector.broadcast %cst_183 : f32 to vector<16x1xf32>
    %327 = arith.addf %323, %326 : vector<16x1xf32>
    %328 = math.rsqrt %327 : vector<16x1xf32>
    %329 = vector.broadcast %328 : vector<16x1xf32> to vector<16x32xf32>
    %330 = arith.mulf %325, %329 : vector<16x32xf32>
    %331 = vector.broadcast %310 : vector<1x32xf32> to vector<16x32xf32>
    %332 = arith.mulf %330, %331 : vector<16x32xf32>
    %333 = vector.broadcast %312 : vector<1x32xf32> to vector<16x32xf32>
    %334 = arith.addf %332, %333 : vector<16x32xf32>
    %335 = arith.truncf %334 : vector<16x32xf32> to vector<16x32xbf16>
    %c1_184 = arith.constant 1 : index
    %c0_185 = arith.constant 0 : index
    %c0_186 = arith.constant 0 : index
    %336 = vector.load %arg14[%c1_184, %c0_185, %c0_186] : memref<2x32x64xbf16, #tpu.memory_space<vmem>>, vector<1x32x64xbf16>
    %337 = vector.shape_cast %336 : vector<1x32x64xbf16> to vector<32x64xbf16>
    %cst_187 = arith.constant dense<0.000000e+00> : vector<16x64xf32>
    %338 = tpu.matmul %335, %337, %cst_187 {dimension_numbers = #tpu.dot_dimension_numbers<[1], [0], [0], [1], [0, 0, 1, 1], [], []>} : vector<16x32xbf16>, vector<32x64xbf16>, vector<16x64xf32> -> vector<16x64xf32>
    %c1_188 = arith.constant 1 : index
    %c0_189 = arith.constant 0 : index
    %c0_190 = arith.constant 0 : index
    %339 = vector.load %arg15[%c1_188, %c0_189, %c0_190] : memref<2x1x64xf32, #tpu.memory_space<vmem>>, vector<1x1x64xf32>
    %340 = vector.shape_cast %339 : vector<1x1x64xf32> to vector<1x64xf32>
    %341 = vector.broadcast %340 : vector<1x64xf32> to vector<16x64xf32>
    %342 = arith.addf %338, %341 : vector<16x64xf32>
    %cst_191 = arith.constant 5.000000e-01 : f32
    %343 = vector.broadcast %cst_191 : f32 to vector<16x64xf32>
    %344 = arith.mulf %343, %342 : vector<16x64xf32>
    %cst_192 = arith.constant 4.471500e-02 : f32
    %345 = vector.broadcast %cst_192 : f32 to vector<16x64xf32>
    %346 = arith.mulf %345, %342 : vector<16x64xf32>
    %347 = arith.mulf %346, %342 : vector<16x64xf32>
    %348 = arith.mulf %347, %342 : vector<16x64xf32>
    %349 = arith.addf %342, %348 : vector<16x64xf32>
    %cst_193 = arith.constant 0.797884583 : f32
    %350 = vector.broadcast %cst_193 : f32 to vector<16x64xf32>
    %351 = arith.mulf %350, %349 : vector<16x64xf32>
    %352 = math.tanh %351 : vector<16x64xf32>
    %cst_194 = arith.constant 1.000000e+00 : f32
    %353 = vector.broadcast %cst_194 : f32 to vector<16x64xf32>
    %354 = arith.addf %353, %352 : vector<16x64xf32>
    %355 = arith.mulf %344, %354 : vector<16x64xf32>
    %356 = arith.truncf %355 : vector<16x64xf32> to vector<16x64xbf16>
    %c1_195 = arith.constant 1 : index
    %c0_196 = arith.constant 0 : index
    %c0_197 = arith.constant 0 : index
    %357 = vector.load %arg16[%c1_195, %c0_196, %c0_197] : memref<2x64x32xbf16, #tpu.memory_space<vmem>>, vector<1x64x32xbf16>
    %358 = vector.shape_cast %357 : vector<1x64x32xbf16> to vector<64x32xbf16>
    %cst_198 = arith.constant dense<0.000000e+00> : vector<16x32xf32>
    %359 = tpu.matmul %356, %358, %cst_198 {dimension_numbers = #tpu.dot_dimension_numbers<[1], [0], [0], [1], [0, 0, 1, 1], [], []>} : vector<16x64xbf16>, vector<64x32xbf16>, vector<16x32xf32> -> vector<16x32xf32>
    %c1_199 = arith.constant 1 : index
    %c0_200 = arith.constant 0 : index
    %c0_201 = arith.constant 0 : index
    %360 = vector.load %arg17[%c1_199, %c0_200, %c0_201] : memref<2x1x32xf32, #tpu.memory_space<vmem>>, vector<1x1x32xf32>
    %361 = vector.shape_cast %360 : vector<1x1x32xf32> to vector<1x32xf32>
    %362 = vector.broadcast %361 : vector<1x32xf32> to vector<16x32xf32>
    %363 = arith.addf %359, %362 : vector<16x32xf32>
    %364 = arith.addf %334, %363 : vector<16x32xf32>
    %c1_202 = arith.constant 1 : index
    %c0_203 = arith.constant 0 : index
    %c0_204 = arith.constant 0 : index
    %365 = vector.load %arg18[%c1_202, %c0_203, %c0_204] : memref<2x1x32xf32, #tpu.memory_space<vmem>>, vector<1x1x32xf32>
    %366 = vector.shape_cast %365 : vector<1x1x32xf32> to vector<1x32xf32>
    %c1_205 = arith.constant 1 : index
    %c0_206 = arith.constant 0 : index
    %c0_207 = arith.constant 0 : index
    %367 = vector.load %arg19[%c1_205, %c0_206, %c0_207] : memref<2x1x32xf32, #tpu.memory_space<vmem>>, vector<1x1x32xf32>
    %368 = vector.shape_cast %367 : vector<1x1x32xf32> to vector<1x32xf32>
    %cst_208 = arith.constant dense<0.000000e+00> : vector<16xf32>
    %369 = vector.multi_reduction <add>, %364, %cst_208 [1] : vector<16x32xf32> to vector<16xf32>
    %370 = vector.shape_cast %369 : vector<16xf32> to vector<16x1xf32>
    %cst_209 = arith.constant 3.200000e+01 : f32
    %371 = vector.broadcast %cst_209 : f32 to vector<16x1xf32>
    %372 = arith.divf %370, %371 : vector<16x1xf32>
    %373 = vector.broadcast %372 : vector<16x1xf32> to vector<16x32xf32>
    %374 = arith.subf %364, %373 : vector<16x32xf32>
    %375 = arith.mulf %374, %374 : vector<16x32xf32>
    %cst_210 = arith.constant dense<0.000000e+00> : vector<16xf32>
    %376 = vector.multi_reduction <add>, %375, %cst_210 [1] : vector<16x32xf32> to vector<16xf32>
    %377 = vector.shape_cast %376 : vector<16xf32> to vector<16x1xf32>
    %cst_211 = arith.constant 3.200000e+01 : f32
    %378 = vector.broadcast %cst_211 : f32 to vector<16x1xf32>
    %379 = arith.divf %377, %378 : vector<16x1xf32>
    %380 = vector.broadcast %372 : vector<16x1xf32> to vector<16x32xf32>
    %381 = arith.subf %364, %380 : vector<16x32xf32>
    %cst_212 = arith.constant 9.99999996E-13 : f32
    %382 = vector.broadcast %cst_212 : f32 to vector<16x1xf32>
    %383 = arith.addf %379, %382 : vector<16x1xf32>
    %384 = math.rsqrt %383 : vector<16x1xf32>
    %385 = vector.broadcast %384 : vector<16x1xf32> to vector<16x32xf32>
    %386 = arith.mulf %381, %385 : vector<16x32xf32>
    %387 = vector.broadcast %366 : vector<1x32xf32> to vector<16x32xf32>
    %388 = arith.mulf %386, %387 : vector<16x32xf32>
    %389 = vector.broadcast %368 : vector<1x32xf32> to vector<16x32xf32>
    %390 = arith.addf %388, %389 : vector<16x32xf32>
    %c0_213 = arith.constant 0 : index
    %c0_214 = arith.constant 0 : index
    %c0_215 = arith.constant 0 : index
    %391 = vector.load %arg3[%c0_213, %c0_214, %c0_215] : memref<1x2x16xf32, #tpu.memory_space<vmem>>, vector<1x2x16xf32>
    %392 = vector.shape_cast %391 : vector<1x2x16xf32> to vector<2x16xf32>
    %393 = arith.truncf %392 : vector<2x16xf32> to vector<2x16xbf16>
    %394 = arith.truncf %390 : vector<16x32xf32> to vector<16x32xbf16>
    %cst_216 = arith.constant dense<0.000000e+00> : vector<2x32xf32>
    %395 = tpu.matmul %393, %394, %cst_216 {dimension_numbers = #tpu.dot_dimension_numbers<[1], [0], [0], [1], [0, 0, 1, 1], [], []>} : vector<2x16xbf16>, vector<16x32xbf16>, vector<2x32xf32> -> vector<2x32xf32>
    %cst_217 = arith.constant dense<0.000000e+00> : vector<2xf32>
    %396 = vector.multi_reduction <add>, %392, %cst_217 [1] : vector<2x16xf32> to vector<2xf32>
    %397 = vector.shape_cast %396 : vector<2xf32> to vector<2x1xf32>
    %cst_218 = arith.constant 9.99999971E-10 : f32
    %398 = vector.broadcast %cst_218 : f32 to vector<2x1xf32>
    %399 = arith.maximumf %397, %398 : vector<2x1xf32>
    %400 = tpu.reciprocal %399 {approx = true} : vector<2x1xf32> -> vector<2x1xf32>
    %401 = vector.broadcast %400 : vector<2x1xf32> to vector<2x32xf32>
    %402 = arith.mulf %395, %401 : vector<2x32xf32>
    %403 = arith.truncf %402 : vector<2x32xf32> to vector<2x32xbf16>
    %c0_219 = arith.constant 0 : index
    %c0_220 = arith.constant 0 : index
    %404 = vector.load %arg20[%c0_219, %c0_220] : memref<32x128xbf16, #tpu.memory_space<vmem>>, vector<32x128xbf16>
    %cst_221 = arith.constant dense<0.000000e+00> : vector<2x128xf32>
    %405 = tpu.matmul %403, %404, %cst_221 {dimension_numbers = #tpu.dot_dimension_numbers<[1], [0], [0], [1], [0, 0, 1, 1], [], []>} : vector<2x32xbf16>, vector<32x128xbf16>, vector<2x128xf32> -> vector<2x128xf32>
    %c0_222 = arith.constant 0 : index
    %c0_223 = arith.constant 0 : index
    %406 = vector.load %arg21[%c0_222, %c0_223] : memref<1x128xf32, #tpu.memory_space<vmem>>, vector<1x128xf32>
    %407 = vector.broadcast %406 : vector<1x128xf32> to vector<2x128xf32>
    %408 = arith.addf %405, %407 : vector<2x128xf32>
    %409 = vector.shape_cast %408 : vector<2x128xf32> to vector<1x2x128xf32>
    %c0_224 = arith.constant 0 : index
    %c0_225 = arith.constant 0 : index
    %c0_226 = arith.constant 0 : index
    %410 = vector.load %arg22[%c0_224, %c0_225, %c0_226] : memref<1x2x128xf32, #tpu.memory_space<vmem>>, vector<1x2x128xf32>
    tpu.vector_store %arg22[%c0_224, %c0_225, %c0_226], %409 {strides = array<i32>} : memref<1x2x128xf32, #tpu.memory_space<vmem>>, vector<1x2x128xf32>,
    return
  }
  func.func @transform_0(%arg0: i32) -> (i32, i32, i32) {
    %c0_i32 = arith.constant 0 : i32
    %c0_i32_0 = arith.constant 0 : i32
    %c0_i32_1 = arith.constant 0 : i32
    return %arg0, %c0_i32, %c0_i32_0 : i32, i32, i32
  }
  func.func @transform_1(%arg0: i32) -> (i32, i32, i32) {
    %c0_i32 = arith.constant 0 : i32
    %c0_i32_0 = arith.constant 0 : i32
    %c0_i32_1 = arith.constant 0 : i32
    return %arg0, %c0_i32, %c0_i32_0 : i32, i32, i32
  }
  func.func @transform_2(%arg0: i32) -> (i32, i32, i32) {
    %c0_i32 = arith.constant 0 : i32
    %c0_i32_0 = arith.constant 0 : i32
    %c0_i32_1 = arith.constant 0 : i32
    return %arg0, %c0_i32, %c0_i32_0 : i32, i32, i32
  }
  func.func @transform_3(%arg0: i32) -> (i32, i32) {
    %c0_i32 = arith.constant 0 : i32
    %c0_i32_0 = arith.constant 0 : i32
    %c0_i32_1 = arith.constant 0 : i32
    return %c0_i32, %c0_i32_0 : i32, i32
  }
  func.func @transform_4(%arg0: i32) -> (i32, i32) {
    %c0_i32 = arith.constant 0 : i32
    %c0_i32_0 = arith.constant 0 : i32
    %c0_i32_1 = arith.constant 0 : i32
    return %c0_i32, %c0_i32_0 : i32, i32
  }
  func.func @transform_5(%arg0: i32) -> (i32, i32) {
    %c0_i32 = arith.constant 0 : i32
    %c0_i32_0 = arith.constant 0 : i32
    %c0_i32_1 = arith.constant 0 : i32
    return %c0_i32, %c0_i32_0 : i32, i32
  }
  func.func @transform_6(%arg0: i32) -> (i32, i32) {
    %c0_i32 = arith.constant 0 : i32
    %c0_i32_0 = arith.constant 0 : i32
    %c0_i32_1 = arith.constant 0 : i32
    return %c0_i32, %c0_i32_0 : i32, i32
  }
  func.func @transform_7(%arg0: i32) -> (i32, i32, i32) {
    %c0_i32 = arith.constant 0 : i32
    %c0_i32_0 = arith.constant 0 : i32
    %c0_i32_1 = arith.constant 0 : i32
    %c0_i32_2 = arith.constant 0 : i32
    return %c0_i32, %c0_i32_0, %c0_i32_1 : i32, i32, i32
  }
  func.func @transform_8(%arg0: i32) -> (i32, i32, i32) {
    %c0_i32 = arith.constant 0 : i32
    %c0_i32_0 = arith.constant 0 : i32
    %c0_i32_1 = arith.constant 0 : i32
    %c0_i32_2 = arith.constant 0 : i32
    return %c0_i32, %c0_i32_0, %c0_i32_1 : i32, i32, i32
  }
  func.func @transform_9(%arg0: i32) -> (i32, i32, i32) {
    %c0_i32 = arith.constant 0 : i32
    %c0_i32_0 = arith.constant 0 : i32
    %c0_i32_1 = arith.constant 0 : i32
    %c0_i32_2 = arith.constant 0 : i32
    return %c0_i32, %c0_i32_0, %c0_i32_1 : i32, i32, i32
  }
  func.func @transform_10(%arg0: i32) -> (i32, i32, i32) {
    %c0_i32 = arith.constant 0 : i32
    %c0_i32_0 = arith.constant 0 : i32
    %c0_i32_1 = arith.constant 0 : i32
    %c0_i32_2 = arith.constant 0 : i32
    return %c0_i32, %c0_i32_0, %c0_i32_1 : i32, i32, i32
  }
  func.func @transform_11(%arg0: i32) -> (i32, i32, i32) {
    %c0_i32 = arith.constant 0 : i32
    %c0_i32_0 = arith.constant 0 : i32
    %c0_i32_1 = arith.constant 0 : i32
    %c0_i32_2 = arith.constant 0 : i32
    return %c0_i32, %c0_i32_0, %c0_i32_1 : i32, i32, i32
  }
  func.func @transform_12(%arg0: i32) -> (i32, i32, i32) {
    %c0_i32 = arith.constant 0 : i32
    %c0_i32_0 = arith.constant 0 : i32
    %c0_i32_1 = arith.constant 0 : i32
    %c0_i32_2 = arith.constant 0 : i32
    return %c0_i32, %c0_i32_0, %c0_i32_1 : i32, i32, i32
  }
  func.func @transform_13(%arg0: i32) -> (i32, i32, i32) {
    %c0_i32 = arith.constant 0 : i32
    %c0_i32_0 = arith.constant 0 : i32
    %c0_i32_1 = arith.constant 0 : i32
    %c0_i32_2 = arith.constant 0 : i32
    return %c0_i32, %c0_i32_0, %c0_i32_1 : i32, i32, i32
  }
  func.func @transform_14(%arg0: i32) -> (i32, i32, i32) {
    %c0_i32 = arith.constant 0 : i32
    %c0_i32_0 = arith.constant 0 : i32
    %c0_i32_1 = arith.constant 0 : i32
    %c0_i32_2 = arith.constant 0 : i32
    return %c0_i32, %c0_i32_0, %c0_i32_1 : i32, i32, i32
  }
  func.func @transform_15(%arg0: i32) -> (i32, i32, i32) {
    %c0_i32 = arith.constant 0 : i32
    %c0_i32_0 = arith.constant 0 : i32
    %c0_i32_1 = arith.constant 0 : i32
    %c0_i32_2 = arith.constant 0 : i32
    return %c0_i32, %c0_i32_0, %c0_i32_1 : i32, i32, i32
  }
  func.func @transform_16(%arg0: i32) -> (i32, i32, i32) {
    %c0_i32 = arith.constant 0 : i32
    %c0_i32_0 = arith.constant 0 : i32
    %c0_i32_1 = arith.constant 0 : i32
    %c0_i32_2 = arith.constant 0 : i32
    return %c0_i32, %c0_i32_0, %c0_i32_1 : i32, i32, i32
  }
  func.func @transform_17(%arg0: i32) -> (i32, i32, i32) {
    %c0_i32 = arith.constant 0 : i32
    %c0_i32_0 = arith.constant 0 : i32
    %c0_i32_1 = arith.constant 0 : i32
    %c0_i32_2 = arith.constant 0 : i32
    return %c0_i32, %c0_i32_0, %c0_i32_1 : i32, i32, i32
  }
  func.func @transform_18(%arg0: i32) -> (i32, i32, i32) {
    %c0_i32 = arith.constant 0 : i32
    %c0_i32_0 = arith.constant 0 : i32
    %c0_i32_1 = arith.constant 0 : i32
    %c0_i32_2 = arith.constant 0 : i32
    return %c0_i32, %c0_i32_0, %c0_i32_1 : i32, i32, i32
  }
  func.func @transform_19(%arg0: i32) -> (i32, i32) {
    %c0_i32 = arith.constant 0 : i32
    %c0_i32_0 = arith.constant 0 : i32
    %c0_i32_1 = arith.constant 0 : i32
    return %c0_i32, %c0_i32_0 : i32, i32
  }
  func.func @transform_20(%arg0: i32) -> (i32, i32) {
    %c0_i32 = arith.constant 0 : i32
    %c0_i32_0 = arith.constant 0 : i32
    %c0_i32_1 = arith.constant 0 : i32
    return %c0_i32, %c0_i32_0 : i32, i32
  }
  func.func @transform_21(%arg0: i32) -> (i32, i32, i32) {
    %c0_i32 = arith.constant 0 : i32
    %c0_i32_0 = arith.constant 0 : i32
    %c0_i32_1 = arith.constant 0 : i32
    return %arg0, %c0_i32, %c0_i32_0 : i32, i32, i32
  }
}

</mosaic_0001>

<llo_original>
// kernel: forward.1
$region0: #{forward.1}
  #allocation0 [shape = 'u32[]', space=smem, size = 0x4, offset = 0x4, fixed_abs, tag = 'smem constant byte address 0x4 - core index']
  #allocation1 [shape = 'u32[72,128]{1,0:T(1,128)}', space=vmem, size = 0x9000, scoped, tag = 'internal scratch']
  %s0 = inlined_call_operand.vmem [shape: s32[1,16,1], index: 0, kind: input, shape index: {}]
  %s1 = inlined_call_operand.vmem [shape: f32[1,16,16], index: 1, kind: input, shape index: {}]
  %s2 = inlined_call_operand.vmem [shape: f32[1,2,16], index: 2, kind: input, shape index: {}]
  %s3 = inlined_call_operand.vmem [shape: f32[128,32], index: 3, kind: input, shape index: {}]
  %s4 = inlined_call_operand.vmem [shape: f32[16,32], index: 4, kind: input, shape index: {}]
  %s5 = inlined_call_operand.vmem [shape: f32[1,32], index: 5, kind: input, shape index: {}]
  %s6 = inlined_call_operand.vmem [shape: f32[1,32], index: 6, kind: input, shape index: {}]
  %s7 = inlined_call_operand.vmem [shape: bf16[12,32,16], index: 7, kind: input, shape index: {}]
  %s8 = inlined_call_operand.vmem [shape: f32[12,1,16], index: 8, kind: input, shape index: {}]
  %s9 = inlined_call_operand.vmem [shape: bf16[4,16,32], index: 9, kind: input, shape index: {}]
  %s10 = inlined_call_operand.vmem [shape: f32[2,1,32], index: 10, kind: input, shape index: {}]
  %s11 = inlined_call_operand.vmem [shape: f32[2,1,32], index: 11, kind: input, shape index: {}]
  %s12 = inlined_call_operand.vmem [shape: f32[2,1,32], index: 12, kind: input, shape index: {}]
  %s13 = inlined_call_operand.vmem [shape: bf16[2,32,64], index: 13, kind: input, shape index: {}]
  %s14 = inlined_call_operand.vmem [shape: f32[2,1,64], index: 14, kind: input, shape index: {}]
  %s15 = inlined_call_operand.vmem [shape: bf16[2,64,32], index: 15, kind: input, shape index: {}]
  %s16 = inlined_call_operand.vmem [shape: f32[2,1,32], index: 16, kind: input, shape index: {}]
  %s17 = inlined_call_operand.vmem [shape: f32[2,1,32], index: 17, kind: input, shape index: {}]
  %s18 = inlined_call_operand.vmem [shape: f32[2,1,32], index: 18, kind: input, shape index: {}]
  %s19 = inlined_call_operand.vmem [shape: bf16[32,128], index: 19, kind: input, shape index: {}]
  %s20 = inlined_call_operand.vmem [shape: f32[1,128], index: 20, kind: input, shape index: {}]
  %s21 = inlined_call_operand.vmem [shape: f32[1,2,128], index: 21, kind: output, shape index: {}]
  %s22 = sld [smem:[#allocation0]]
  $region94: #{forward.1} parent=0
    _
  %s24 = ssub.s32 1, %s22
  %s25 = scalar_select 0, %s24, %s22
  // Predicated region
  $region2: #{forward.1} parent=0 // pred_check
    _
  $region3: #{forward.1} parent=0 // pred_check_branch
    %27 = sbr.rel (0) target = $region5
  $region4: #{forward.1} parent=0 // pred_region
    _
  $region5: #{forward.1} parent=0 // pred_fallthru
    _
  // Predicated region
  $region6: #{forward.1} parent=0 // pred_check
    _
  $region7: #{forward.1} parent=0 // pred_check_branch
    %29 = sbr.rel (0) target = $region9
  $region8: #{forward.1} parent=0 // pred_region
    _
  $region9: #{forward.1} parent=0 // pred_fallthru
    _
  // Predicated region
  $region10: #{forward.1} parent=0 // pred_check
    _
  $region11: #{forward.1} parent=0 // pred_check_branch
    %31 = sbr.rel (0) target = $region13
  $region12: #{forward.1} parent=0 // pred_region
    _
  $region13: #{forward.1} parent=0 // pred_fallthru
    _
  // Predicated region
  $region14: #{forward.1} parent=0 // pred_check
    _
  $region15: #{forward.1} parent=0 // pred_check_branch
    %33 = sbr.rel (0) target = $region17
  $region16: #{forward.1} parent=0 // pred_region
    _
  $region17: #{forward.1} parent=0 // pred_fallthru
    _
  // Predicated region
  $region18: #{forward.1} parent=0 // pred_check
    _
  $region19: #{forward.1} parent=0 // pred_check_branch
    %35 = sbr.rel (0) target = $region21
  $region20: #{forward.1} parent=0 // pred_region
    _
  $region21: #{forward.1} parent=0 // pred_fallthru
    _
  // Predicated region
  $region22: #{forward.1} parent=0 // pred_check
    _
  $region23: #{forward.1} parent=0 // pred_check_branch
    %37 = sbr.rel (0) target = $region25
  $region24: #{forward.1} parent=0 // pred_region
    _
  $region25: #{forward.1} parent=0 // pred_fallthru
    _
  // Predicated region
  $region26: #{forward.1} parent=0 // pred_check
    _
  $region27: #{forward.1} parent=0 // pred_check_branch
    %39 = sbr.rel (0) target = $region29
  $region28: #{forward.1} parent=0 // pred_region
    _
  $region29: #{forward.1} parent=0 // pred_fallthru
    _
  // Predicated region
  $region30: #{forward.1} parent=0 // pred_check
    _
  $region31: #{forward.1} parent=0 // pred_check_branch
    %41 = sbr.rel (0) target = $region33
  $region32: #{forward.1} parent=0 // pred_region
    _
  $region33: #{forward.1} parent=0 // pred_fallthru
    _
  // Predicated region
  $region34: #{forward.1} parent=0 // pred_check
    _
  $region35: #{forward.1} parent=0 // pred_check_branch
    %43 = sbr.rel (0) target = $region37
  $region36: #{forward.1} parent=0 // pred_region
    _
  $region37: #{forward.1} parent=0 // pred_fallthru
    _
  // Predicated region
  $region38: #{forward.1} parent=0 // pred_check
    _
  $region39: #{forward.1} parent=0 // pred_check_branch
    %45 = sbr.rel (0) target = $region41
  $region40: #{forward.1} parent=0 // pred_region
    _
  $region41: #{forward.1} parent=0 // pred_fallthru
    _
  // Predicated region
  $region42: #{forward.1} parent=0 // pred_check
    _
  $region43: #{forward.1} parent=0 // pred_check_branch
    %47 = sbr.rel (0) target = $region45
  $region44: #{forward.1} parent=0 // pred_region
    _
  $region45: #{forward.1} parent=0 // pred_fallthru
    _
  // Predicated region
  $region46: #{forward.1} parent=0 // pred_check
    _
  $region47: #{forward.1} parent=0 // pred_check_branch
    %49 = sbr.rel (0) target = $region49
  $region48: #{forward.1} parent=0 // pred_region
    _
  $region49: #{forward.1} parent=0 // pred_fallthru
    _
  // Predicated region
  $region50: #{forward.1} parent=0 // pred_check
    _
  $region51: #{forward.1} parent=0 // pred_check_branch
    %51 = sbr.rel (0) target = $region53
  $region52: #{forward.1} parent=0 // pred_region
    _
  $region53: #{forward.1} parent=0 // pred_fallthru
    _
  // Predicated region
  $region54: #{forward.1} parent=0 // pred_check
    _
  $region55: #{forward.1} parent=0 // pred_check_branch
    %53 = sbr.rel (0) target = $region57
  $region56: #{forward.1} parent=0 // pred_region
    _
  $region57: #{forward.1} parent=0 // pred_fallthru
    _
  // Predicated region
  $region58: #{forward.1} parent=0 // pred_check
    _
  $region59: #{forward.1} parent=0 // pred_check_branch
    %55 = sbr.rel (0) target = $region61
  $region60: #{forward.1} parent=0 // pred_region
    _
  $region61: #{forward.1} parent=0 // pred_fallthru
    _
  // Predicated region
  $region62: #{forward.1} parent=0 // pred_check
    _
  $region63: #{forward.1} parent=0 // pred_check_branch
    %57 = sbr.rel (0) target = $region65
  $region64: #{forward.1} parent=0 // pred_region
    _
  $region65: #{forward.1} parent=0 // pred_fallthru
    _
  // Predicated region
  $region66: #{forward.1} parent=0 // pred_check
    _
  $region67: #{forward.1} parent=0 // pred_check_branch
    %59 = sbr.rel (0) target = $region69
  $region68: #{forward.1} parent=0 // pred_region
    _
  $region69: #{forward.1} parent=0 // pred_fallthru
    _
  // Predicated region
  $region70: #{forward.1} parent=0 // pred_check
    _
  $region71: #{forward.1} parent=0 // pred_check_branch
    %61 = sbr.rel (0) target = $region73
  $region72: #{forward.1} parent=0 // pred_region
    _
  $region73: #{forward.1} parent=0 // pred_fallthru
    _
  // Predicated region
  $region74: #{forward.1} parent=0 // pred_check
    _
  $region75: #{forward.1} parent=0 // pred_check_branch
    %63 = sbr.rel (0) target = $region77
  $region76: #{forward.1} parent=0 // pred_region
    _
  $region77: #{forward.1} parent=0 // pred_fallthru
    _
  // Predicated region
  $region78: #{forward.1} parent=0 // pred_check
    _
  $region79: #{forward.1} parent=0 // pred_check_branch
    %65 = sbr.rel (0) target = $region81
  $region80: #{forward.1} parent=0 // pred_region
    _
  $region81: #{forward.1} parent=0 // pred_fallthru
    _
  // Predicated region
  $region82: #{forward.1} parent=0 // pred_check
    _
  $region83: #{forward.1} parent=0 // pred_check_branch
    %67 = sbr.rel (0) target = $region85
  $region84: #{forward.1} parent=0 // pred_region
    _
  $region85: #{forward.1} parent=0 // pred_fallthru
    _
  %v69 = vld [vmem:[%s0] sm:$0xff]
  %v70 = vld [vmem:[%s0 + $0x8] sm:$0xff]
  %v71 = vlaneseq
  %v72 = vand.u32 %v71, 127
  %73 = vset.pattern.permute.xlu0 0
  %74 = vperm.xlu0 %73, %v69
  %v75 = vpop.permute.xlu0 %74
  %76 = vset.pattern.permute.xlu0 0
  %77 = vperm.xlu0 %76, %v70
  %v78 = vpop.permute.xlu0 %77
  %vm79 = vcmp.eq.s32.totalorder %v72, %v75
  %vm80 = vcmp.eq.s32.totalorder %v72, %v78
  %v81 = vsel %vm79, 1, 0
  %v82 = vsel %vm80, 1, 0
  %v83 = vcvt.s32.f32 %v81
  %v84 = vcvt.s32.f32 %v82
  %v85 = vld [vmem:[%s3] sm:$0xff]
  %v86 = vld [vmem:[%s3 + $0x8] sm:$0xff]
  %v87 = vld [vmem:[%s3 + $0x10] sm:$0xff]
  %v88 = vld [vmem:[%s3 + $0x18] sm:$0xff]
  %v89 = vld [vmem:[%s3 + $0x20] sm:$0xff]
  %v90 = vld [vmem:[%s3 + $0x28] sm:$0xff]
  %v91 = vld [vmem:[%s3 + $0x30] sm:$0xff]
  %v92 = vld [vmem:[%s3 + $0x38] sm:$0xff]
  %v93 = vld [vmem:[%s3 + $0x40] sm:$0xff]
  %v94 = vld [vmem:[%s3 + $0x48] sm:$0xff]
  %v95 = vld [vmem:[%s3 + $0x50] sm:$0xff]
  %v96 = vld [vmem:[%s3 + $0x58] sm:$0xff]
  %v97 = vld [vmem:[%s3 + $0x60] sm:$0xff]
  %v98 = vld [vmem:[%s3 + $0x68] sm:$0xff]
  %v99 = vld [vmem:[%s3 + $0x70] sm:$0xff]
  %v100 = vld [vmem:[%s3 + $0x78] sm:$0xff]
  %v101 = vld [vmem:[%s4] sm:$0xff]
  %v102 = vld [vmem:[%s4 + $0x8] sm:$0xff]
  %103 = vmatpush.msra.mxu0 %v100
  %104 = vmatpush.msra.mxu0 %v99
  %105 = vmatpush.msra.mxu0 %v98
  %106 = vmatpush.msra.mxu0 %v97
  %107 = vmatpush.msra.mxu0 %v96
  %108 = vmatpush.msra.mxu0 %v95
  %109 = vmatpush.msra.mxu0 %v94
  %110 = vmatpush.msra.mxu0 %v93
  %111 = vmatpush.msra.mxu0 %v92
  %112 = vmatpush.msra.mxu0 %v91
  %113 = vmatpush.msra.mxu0 %v90
  %114 = vmatpush.msra.mxu0 %v89
  %115 = vmatpush.msra.mxu0 %v88
  %116 = vmatpush.msra.mxu0 %v87
  %117 = vmatpush.msra.mxu0 %v86
  %118 = vmatpush.msra.mxu0 %v85
  %119 = vmatmul.f32.gmra.mxu0 %v83
  %v120 = vpop.f32.mrf.mxu0
  %v121 = vadd.f32 %v101, %v120
  %122 = vmatmul.f32.gmra.mxu0 %v84
  %v123 = vpop.f32.mrf.mxu0
  %v124 = vadd.f32 %v102, %v123
  %125 = vdwg.mxu0
  %v126 = vld [vmem:[%s5] sm:$0x1]
  %v127 = vld [vmem:[%s6] sm:$0x1]
  %vm128 = vcmask 261120
  %v129 = vsel %vm128, %v121, 0.0
  %130 = vadd.xlane.f32.xlu0 %v129
  %v131 = vpop.xlane.xlu0 %130
  %v132 = vsel %vm128, %v124, 0.0
  %133 = vadd.xlane.f32.xlu0 %v132
  %v134 = vpop.xlane.xlu0 %133
  %v135 = vrcp.pop 32.0
  %v136 = vmul.f32 32.0, %v135
  %v137 = vsub.f32 1.0, %v136
  %v138 = vmul.f32 %v135, %v137
  %v139 = vadd.f32 %v135, %v138
  %vm140 = vweird.f32 %v135
  %v141 = vsel %vm140, %v135, %v139
  %v142 = vmul.f32 %v131, %v141
  %v143 = vmul.f32 %v134, %v141
  %v144 = vsub.f32 %v121, %v142
  %v145 = vsub.f32 %v124, %v143
  %v146 = vmul.f32 %v144, %v144
  %v147 = vmul.f32 %v145, %v145
  %v148 = vsel %vm128, %v146, 0.0
  %149 = vadd.xlane.f32.xlu0 %v148
  %v150 = vpop.xlane.xlu0 %149
  %v151 = vsel %vm128, %v147, 0.0
  %152 = vadd.xlane.f32.xlu0 %v151
  %v153 = vpop.xlane.xlu0 %152
  %v154 = vmul.f32 %v150, %v141
  %v155 = vmul.f32 %v153, %v141
  %v156 = vadd.f32 %v154, 1e-12
  %v157 = vadd.f32 %v155, 1e-12
  %v158 = vrsqrt.pop %v156
  %v159 = vmul.f32 %v158, %v156
  %v160 = vmul.f32 %v159, %v158
  %v161 = vmul.f32 0.5, %v160
  %v162 = vsub.f32 1.5, %v161
  %v163 = vmul.f32 %v158, %v162
  %vm164 = vweird.f32 %v156
  %vm165 = vweird.f32 %v158
  %vm166 = vmor %vm164, %vm165
  %v167 = vsel %vm166, %v158, %v163
  %v168 = vrsqrt.pop %v157
  %v169 = vmul.f32 %v168, %v157
  %v170 = vmul.f32 %v169, %v168
  %v171 = vmul.f32 0.5, %v170
  %v172 = vsub.f32 1.5, %v171
  %v173 = vmul.f32 %v168, %v172
  %vm174 = vweird.f32 %v157
  %vm175 = vweird.f32 %v168
  %vm176 = vmor %vm174, %vm175
  %v177 = vsel %vm176, %v168, %v173
  %v178 = vmul.f32 %v144, %v167
  %v179 = vmul.f32 %v145, %v177
  %v181 = vperm.slane %v126, 0
  %v183 = vmul.f32 %v178, %v181
  %v184 = vmul.f32 %v179, %v181
  %v186 = vperm.slane %v127, 0
  %v188 = vadd.f32 %v183, %v186
  %v189 = vadd.f32 %v184, %v186
  %v190 = vld [vmem:[%s1] sm:$0xff]
  %v191 = vld [vmem:[%s1 + $0x8] sm:$0xff]
  %v192 = vpack.c.bf16 %v189, %v188
  %v193 = vld [vmem:[%s7] sm:$0xf]
  %v194 = vld [vmem:[%s7 + $0x4] sm:$0xf]
  %v195 = vld [vmem:[%s7 + $0x8] sm:$0xf]
  %v196 = vld [vmem:[%s7 + $0xc] sm:$0xf]
  %v197 = vld [vmem:[%s8] sm:$0x1]
  %v199 = vperm.slane %v197, 0
  %v205 = vunpack.c.l.b16 %v193
  %v206 = vunpack.c.l.b16 %v194
  %v207 = vunpack.c.l.b16 %v195
  %v208 = vunpack.c.l.b16 %v196
  %v209 = vpack.c.b16 %v206, %v205
  %v210 = vpack.c.b16 %v208, %v207
  %v214 = vsel %vm128, %v192, 0
  %216 = vmatpush.bf16.msra.mxu0 0
  %217 = vmatpush.bf16.msra.mxu0 0
  %218 = vmatpush.bf16.msra.mxu0 0
  %219 = vmatpush.bf16.msra.mxu0 0
  %220 = vmatpush.bf16.msra.mxu0 0
  %221 = vmatpush.bf16.msra.mxu0 0
  %222 = vmatpush.bf16.msra.mxu0 %v210
  %223 = vmatpush.bf16.msra.mxu0 %v209
  %224 = vmatmul.bf16.gmra.mxu0 %v214
  %v225 = vpop.f32.mrf.mxu0
  %v226 = vadd.f32 %v199, %v225
  %v227 = vpop.f32.mrf.mxu0
  %v228 = vadd.f32 %v199, %v227
  %229 = vdwg.mxu0
  %s230 = scalar_lea.vmem %s7, 16
  %v231 = vld [vmem:[%s230] sm:$0xf]
  %v232 = vld [vmem:[%s230 + $0x4] sm:$0xf]
  %v233 = vld [vmem:[%s230 + $0x8] sm:$0xf]
  %v234 = vld [vmem:[%s230 + $0xc] sm:$0xf]
  %s235 = scalar_lea.vmem %s8, 1
  %v236 = vld [vmem:[%s235] sm:$0x1]
  %v238 = vperm.slane %v236, 0
  %v244 = vunpack.c.l.b16 %v231
  %v245 = vunpack.c.l.b16 %v232
  %v246 = vunpack.c.l.b16 %v233
  %v247 = vunpack.c.l.b16 %v234
  %v248 = vpack.c.b16 %v245, %v244
  %v249 = vpack.c.b16 %v247, %v246
  %252 = vmatpush.bf16.msra.mxu0 0
  %253 = vmatpush.bf16.msra.mxu0 0
  %254 = vmatpush.bf16.msra.mxu0 0
  %255 = vmatpush.bf16.msra.mxu0 0
  %256 = vmatpush.bf16.msra.mxu0 0
  %257 = vmatpush.bf16.msra.mxu0 0
  %258 = vmatpush.bf16.msra.mxu0 %v249
  %259 = vmatpush.bf16.msra.mxu0 %v248
  %260 = vmatmul.bf16.gmra.mxu0 %v214
  %v261 = vpop.f32.mrf.mxu0
  %v262 = vadd.f32 %v238, %v261
  %v263 = vpop.f32.mrf.mxu0
  %v264 = vadd.f32 %v238, %v263
  %265 = vdwg.mxu0
  %s266 = scalar_lea.vmem %s7, 32
  %v267 = vld [vmem:[%s266] sm:$0xf]
  %v268 = vld [vmem:[%s266 + $0x4] sm:$0xf]
  %v269 = vld [vmem:[%s266 + $0x8] sm:$0xf]
  %v270 = vld [vmem:[%s266 + $0xc] sm:$0xf]
  %s271 = scalar_lea.vmem %s8, 2
  %v272 = vld [vmem:[%s271] sm:$0x1]
  %v274 = vperm.slane %v272, 0
  %v280 = vunpack.c.l.b16 %v267
  %v281 = vunpack.c.l.b16 %v268
  %v282 = vunpack.c.l.b16 %v269
  %v283 = vunpack.c.l.b16 %v270
  %v284 = vpack.c.b16 %v281, %v280
  %v285 = vpack.c.b16 %v283, %v282
  %288 = vmatpush.bf16.msra.mxu0 0
  %289 = vmatpush.bf16.msra.mxu0 0
  %290 = vmatpush.bf16.msra.mxu0 0
  %291 = vmatpush.bf16.msra.mxu0 0
  %292 = vmatpush.bf16.msra.mxu0 0
  %293 = vmatpush.bf16.msra.mxu0 0
  %294 = vmatpush.bf16.msra.mxu0 %v285
  %295 = vmatpush.bf16.msra.mxu0 %v284
  %296 = vmatmul.bf16.gmra.mxu0 %v214
  %v297 = vpop.f32.mrf.mxu0
  %v298 = vadd.f32 %v274, %v297
  %v299 = vpop.f32.mrf.mxu0
  %v300 = vadd.f32 %v274, %v299
  %301 = vdwg.mxu0
  %v302 = vpack.c.bf16 %v228, %v226
  %v303 = vpack.c.bf16 %v264, %v262
  %vm304 = vcmask 130048
  %v306 = vsel %vm304, %v302, 0
  %v309 = vsel %vm304, %v303, 0
  %311 = vmatpush.bf16.xpose.msra.mxu0 0
  %312 = vmatpush.bf16.xpose.msra.mxu0 0
  %313 = vmatpush.bf16.xpose.msra.mxu0 0
  %314 = vmatpush.bf16.xpose.msra.mxu0 0
  %315 = vmatpush.bf16.xpose.msra.mxu0 0
  %316 = vmatpush.bf16.xpose.msra.mxu0 0
  %317 = vmatpush.bf16.xpose.msra.mxu0 0
  %318 = vmatpush.bf16.xpose.msra.mxu0 %v309
  %319 = vmatmul.bf16.gmra.mxu0 %v306
  %v320 = vpop.f32.mrf.mxu0
  %v321 = vadd.f32 0.0, %v320
  %v322 = vpop.f32.mrf.mxu0
  %v323 = vadd.f32 0.0, %v322
  %324 = vdwg.mxu0
  %v325 = vmul.f32 %v321, 0.25
  %v326 = vmul.f32 %v323, 0.25
  %v327 = vadd.f32 %v325, %v190
  %v328 = vadd.f32 %v326, %v191
  %v329 = vsel %vm304, %v327, -inf
  %330 = vmax.xlane.f32.xlu0 %v329
  %v331 = vpop.xlane.xlu0 %330
  %v332 = vsel %vm304, %v328, -inf
  %333 = vmax.xlane.f32.xlu0 %v332
  %v334 = vpop.xlane.xlu0 %333
  %v335 = vsub.f32 %v327, %v331
  %v336 = vsub.f32 %v328, %v334
  %v337 = vmul.f32 %v335, 1.442695
  %v338 = vpow.pop %v337
  %v339 = vmul.f32 %v336, 1.442695
  %v340 = vpow.pop %v339
  %v341 = vsel %vm304, %v338, 0.0
  %342 = vadd.xlane.f32.xlu0 %v341
  %v343 = vpop.xlane.xlu0 %342
  %v344 = vsel %vm304, %v340, 0.0
  %345 = vadd.xlane.f32.xlu0 %v344
  %v346 = vpop.xlane.xlu0 %345
  %v347 = vrcp.pop %v343
  %v348 = vrcp.pop %v346
  %v349 = vmul.f32 %v338, %v347
  %v350 = vmul.f32 %v340, %v348
  %v351 = vpack.c.bf16 %v350, %v349
  %v352 = vpack.c.bf16 %v300, %v298
  %v354 = vsel %vm304, %v351, 0
  %356 = vmatpush.bf16.msra.mxu0 0
  %357 = vmatpush.bf16.msra.mxu0 0
  %358 = vmatpush.bf16.msra.mxu0 0
  %359 = vmatpush.bf16.msra.mxu0 0
  %360 = vmatpush.bf16.msra.mxu0 0
  %361 = vmatpush.bf16.msra.mxu0 0
  %362 = vmatpush.bf16.msra.mxu0 0
  %363 = vmatpush.bf16.msra.mxu0 %v352
  %364 = vmatmul.bf16.gmra.mxu0 %v354
  %v365 = vpop.f32.mrf.mxu0
  %v366 = vadd.f32 0.0, %v365
  %v367 = vpop.f32.mrf.mxu0
  %v368 = vadd.f32 0.0, %v367
  %369 = vdwg.mxu0
  %v370 = vpack.c.bf16 %v368, %v366
  %v371 = vld [vmem:[%s9] sm:$0xf]
  %v372 = vld [vmem:[%s9 + $0x4] sm:$0xf]
  %s373 = scalar_lea.vmem %s7, 48
  %v374 = vld [vmem:[%s373] sm:$0xf]
  %v375 = vld [vmem:[%s373 + $0x4] sm:$0xf]
  %v376 = vld [vmem:[%s373 + $0x8] sm:$0xf]
  %v377 = vld [vmem:[%s373 + $0xc] sm:$0xf]
  %s378 = scalar_lea.vmem %s8, 3
  %v379 = vld [vmem:[%s378] sm:$0x1]
  %v381 = vperm.slane %v379, 0
  %v387 = vunpack.c.l.b16 %v374
  %v388 = vunpack.c.l.b16 %v375
  %v389 = vunpack.c.l.b16 %v376
  %v390 = vunpack.c.l.b16 %v377
  %v391 = vpack.c.b16 %v388, %v387
  %v392 = vpack.c.b16 %v390, %v389
  %395 = vmatpush.bf16.msra.mxu0 0
  %396 = vmatpush.bf16.msra.mxu0 0
  %397 = vmatpush.bf16.msra.mxu0 0
  %398 = vmatpush.bf16.msra.mxu0 0
  %399 = vmatpush.bf16.msra.mxu0 0
  %400 = vmatpush.bf16.msra.mxu0 0
  %401 = vmatpush.bf16.msra.mxu0 %v392
  %402 = vmatpush.bf16.msra.mxu0 %v391
  %403 = vmatmul.bf16.gmra.mxu0 %v214
  %v404 = vpop.f32.mrf.mxu0
  %v405 = vadd.f32 %v381, %v404
  %v406 = vpop.f32.mrf.mxu0
  %v407 = vadd.f32 %v381, %v406
  %408 = vdwg.mxu0
  %s409 = scalar_lea.vmem %s7, 64
  %v410 = vld [vmem:[%s409] sm:$0xf]
  %v411 = vld [vmem:[%s409 + $0x4] sm:$0xf]
  %v412 = vld [vmem:[%s409 + $0x8] sm:$0xf]
  %v413 = vld [vmem:[%s409 + $0xc] sm:$0xf]
  %s414 = scalar_lea.vmem %s8, 4
  %v415 = vld [vmem:[%s414] sm:$0x1]
  %v417 = vperm.slane %v415, 0
  %v423 = vunpack.c.l.b16 %v410
  %v424 = vunpack.c.l.b16 %v411
  %v425 = vunpack.c.l.b16 %v412
  %v426 = vunpack.c.l.b16 %v413
  %v427 = vpack.c.b16 %v424, %v423
  %v428 = vpack.c.b16 %v426, %v425
  %431 = vmatpush.bf16.msra.mxu0 0
  %432 = vmatpush.bf16.msra.mxu0 0
  %433 = vmatpush.bf16.msra.mxu0 0
  %434 = vmatpush.bf16.msra.mxu0 0
  %435 = vmatpush.bf16.msra.mxu0 0
  %436 = vmatpush.bf16.msra.mxu0 0
  %437 = vmatpush.bf16.msra.mxu0 %v428
  %438 = vmatpush.bf16.msra.mxu0 %v427
  %439 = vmatmul.bf16.gmra.mxu0 %v214
  %v440 = vpop.f32.mrf.mxu0
  %v441 = vadd.f32 %v417, %v440
  %v442 = vpop.f32.mrf.mxu0
  %v443 = vadd.f32 %v417, %v442
  %444 = vdwg.mxu0
  %s445 = scalar_lea.vmem %s7, 80
  %v446 = vld [vmem:[%s445] sm:$0xf]
  %v447 = vld [vmem:[%s445 + $0x4] sm:$0xf]
  %v448 = vld [vmem:[%s445 + $0x8] sm:$0xf]
  %v449 = vld [vmem:[%s445 + $0xc] sm:$0xf]
  %s450 = scalar_lea.vmem %s8, 5
  %v451 = vld [vmem:[%s450] sm:$0x1]
  %v453 = vperm.slane %v451, 0
  %v459 = vunpack.c.l.b16 %v446
  %v460 = vunpack.c.l.b16 %v447
  %v461 = vunpack.c.l.b16 %v448
  %v462 = vunpack.c.l.b16 %v449
  %v463 = vpack.c.b16 %v460, %v459
  %v464 = vpack.c.b16 %v462, %v461
  %467 = vmatpush.bf16.msra.mxu0 0
  %468 = vmatpush.bf16.msra.mxu0 0
  %469 = vmatpush.bf16.msra.mxu0 0
  %470 = vmatpush.bf16.msra.mxu0 0
  %471 = vmatpush.bf16.msra.mxu0 0
  %472 = vmatpush.bf16.msra.mxu0 0
  %473 = vmatpush.bf16.msra.mxu0 %v464
  %474 = vmatpush.bf16.msra.mxu0 %v463
  %475 = vmatmul.bf16.gmra.mxu0 %v214
  %v476 = vpop.f32.mrf.mxu0
  %v477 = vadd.f32 %v453, %v476
  %v478 = vpop.f32.mrf.mxu0
  %v479 = vadd.f32 %v453, %v478
  %480 = vdwg.mxu0
  %v481 = vpack.c.bf16 %v407, %v405
  %v482 = vpack.c.bf16 %v443, %v441
  %v484 = vsel %vm304, %v481, 0
  %v487 = vsel %vm304, %v482, 0
  %489 = vmatpush.bf16.xpose.msra.mxu0 0
  %490 = vmatpush.bf16.xpose.msra.mxu0 0
  %491 = vmatpush.bf16.xpose.msra.mxu0 0
  %492 = vmatpush.bf16.xpose.msra.mxu0 0
  %493 = vmatpush.bf16.xpose.msra.mxu0 0
  %494 = vmatpush.bf16.xpose.msra.mxu0 0
  %495 = vmatpush.bf16.xpose.msra.mxu0 0
  %496 = vmatpush.bf16.xpose.msra.mxu0 %v487
  %497 = vmatmul.bf16.gmra.mxu0 %v484
  %v498 = vpop.f32.mrf.mxu0
  %v499 = vadd.f32 0.0, %v498
  %v500 = vpop.f32.mrf.mxu0
  %v501 = vadd.f32 0.0, %v500
  %502 = vdwg.mxu0
  %v503 = vmul.f32 %v499, 0.25
  %v504 = vmul.f32 %v501, 0.25
  %v505 = vadd.f32 %v503, %v190
  %v506 = vadd.f32 %v504, %v191
  %v507 = vsel %vm304, %v505, -inf
  %508 = vmax.xlane.f32.xlu0 %v507
  %v509 = vpop.xlane.xlu0 %508
  %v510 = vsel %vm304, %v506, -inf
  %511 = vmax.xlane.f32.xlu0 %v510
  %v512 = vpop.xlane.xlu0 %511
  %v513 = vsub.f32 %v505, %v509
  %v514 = vsub.f32 %v506, %v512
  %v515 = vmul.f32 %v513, 1.442695
  %v516 = vpow.pop %v515
  %v517 = vmul.f32 %v514, 1.442695
  %v518 = vpow.pop %v517
  %v519 = vsel %vm304, %v516, 0.0
  %520 = vadd.xlane.f32.xlu0 %v519
  %v521 = vpop.xlane.xlu0 %520
  %v522 = vsel %vm304, %v518, 0.0
  %523 = vadd.xlane.f32.xlu0 %v522
  %v524 = vpop.xlane.xlu0 %523
  %v525 = vrcp.pop %v521
  %v526 = vrcp.pop %v524
  %v527 = vmul.f32 %v516, %v525
  %v528 = vmul.f32 %v518, %v526
  %v529 = vpack.c.bf16 %v528, %v527
  %v530 = vpack.c.bf16 %v479, %v477
  %v532 = vsel %vm304, %v529, 0
  %534 = vmatpush.bf16.msra.mxu0 0
  %535 = vmatpush.bf16.msra.mxu0 0
  %536 = vmatpush.bf16.msra.mxu0 0
  %537 = vmatpush.bf16.msra.mxu0 0
  %538 = vmatpush.bf16.msra.mxu0 0
  %539 = vmatpush.bf16.msra.mxu0 0
  %540 = vmatpush.bf16.msra.mxu0 0
  %541 = vmatpush.bf16.msra.mxu0 %v530
  %542 = vmatmul.bf16.gmra.mxu0 %v532
  %v543 = vpop.f32.mrf.mxu0
  %v544 = vadd.f32 0.0, %v543
  %v545 = vpop.f32.mrf.mxu0
  %v546 = vadd.f32 0.0, %v545
  %547 = vdwg.mxu0
  %v548 = vpack.c.bf16 %v546, %v544
  %s549 = scalar_lea.vmem %s9, 8
  %v550 = vld [vmem:[%s549] sm:$0xf]
  %v551 = vld [vmem:[%s549 + $0x4] sm:$0xf]
  %v554 = vunpack.c.l.b16 %v550
  %v555 = vunpack.c.l.b16 %v551
  %v556 = vpack.c.b16 %v555, %v554
  %v559 = vsel %vm304, %v548, 0
  %561 = vmatpush.bf16.msra.mxu0 0
  %562 = vmatpush.bf16.msra.mxu0 0
  %563 = vmatpush.bf16.msra.mxu0 0
  %564 = vmatpush.bf16.msra.mxu0 0
  %565 = vmatpush.bf16.msra.mxu0 0
  %566 = vmatpush.bf16.msra.mxu0 0
  %567 = vmatpush.bf16.msra.mxu0 0
  %568 = vmatpush.bf16.msra.mxu0 %v556
  %569 = vmatmul.bf16.gmra.mxu0 %v559
  %v570 = vpop.f32.mrf.mxu0
  %v571 = vadd.f32 0.0, %v570
  %v572 = vpop.f32.mrf.mxu0
  %v573 = vadd.f32 0.0, %v572
  %574 = vdwg.mxu0
  %v577 = vunpack.c.l.b16 %v371
  %v578 = vunpack.c.l.b16 %v372
  %v579 = vpack.c.b16 %v578, %v577
  %v582 = vsel %vm304, %v370, 0
  %584 = vmatpush.bf16.msra.mxu0 0
  %585 = vmatpush.bf16.msra.mxu0 0
  %586 = vmatpush.bf16.msra.mxu0 0
  %587 = vmatpush.bf16.msra.mxu0 0
  %588 = vmatpush.bf16.msra.mxu0 0
  %589 = vmatpush.bf16.msra.mxu0 0
  %590 = vmatpush.bf16.msra.mxu0 0
  %591 = vmatpush.bf16.msra.mxu0 %v579
  %592 = vmatmul.bf16.gmra.mxu0 %v582
  %v593 = vpop.f32.mrf.mxu0
  %v594 = vadd.f32 %v571, %v593
  %v595 = vpop.f32.mrf.mxu0
  %v596 = vadd.f32 %v573, %v595
  %597 = vdwg.mxu0
  %v598 = vadd.f32 %v188, %v594
  %v599 = vadd.f32 %v189, %v596
  %v600 = vld [vmem:[%s10] sm:$0x1]
  %v602 = vperm.slane %v600, 0
  %v604 = vadd.f32 %v598, %v602
  %v605 = vadd.f32 %v599, %v602
  %v606 = vld [vmem:[%s11] sm:$0x1]
  %v607 = vld [vmem:[%s12] sm:$0x1]
  %v608 = vsel %vm128, %v604, 0.0
  %609 = vadd.xlane.f32.xlu0 %v608
  %v610 = vpop.xlane.xlu0 %609
  %v611 = vsel %vm128, %v605, 0.0
  %612 = vadd.xlane.f32.xlu0 %v611
  %v613 = vpop.xlane.xlu0 %612
  %v614 = vmul.f32 %v610, %v141
  %v615 = vmul.f32 %v613, %v141
  %v616 = vsub.f32 %v604, %v614
  %v617 = vsub.f32 %v605, %v615
  %v618 = vmul.f32 %v616, %v616
  %v619 = vmul.f32 %v617, %v617
  %v620 = vsel %vm128, %v618, 0.0
  %621 = vadd.xlane.f32.xlu0 %v620
  %v622 = vpop.xlane.xlu0 %621
  %v623 = vsel %vm128, %v619, 0.0
  %624 = vadd.xlane.f32.xlu0 %v623
  %v625 = vpop.xlane.xlu0 %624
  %v626 = vmul.f32 %v622, %v141
  %v627 = vmul.f32 %v625, %v141
  %v628 = vadd.f32 %v626, 1e-12
  %v629 = vadd.f32 %v627, 1e-12
  %v630 = vrsqrt.pop %v628
  %v631 = vmul.f32 %v630, %v628
  %v632 = vmul.f32 %v631, %v630
  %v633 = vmul.f32 0.5, %v632
  %v634 = vsub.f32 1.5, %v633
  %v635 = vmul.f32 %v630, %v634
  %vm636 = vweird.f32 %v628
  %vm637 = vweird.f32 %v630
  %vm638 = vmor %vm636, %vm637
  %v639 = vsel %vm638, %v630, %v635
  %v640 = vrsqrt.pop %v629
  %v641 = vmul.f32 %v640, %v629
  %v642 = vmul.f32 %v641, %v640
  %v643 = vmul.f32 0.5, %v642
  %v644 = vsub.f32 1.5, %v643
  %v645 = vmul.f32 %v640, %v644
  %vm646 = vweird.f32 %v629
  %vm647 = vweird.f32 %v640
  %vm648 = vmor %vm646, %vm647
  %v649 = vsel %vm648, %v640, %v645
  %v650 = vmul.f32 %v616, %v639
  %v651 = vmul.f32 %v617, %v649
  %v653 = vperm.slane %v606, 0
  %v655 = vmul.f32 %v650, %v653
  %v656 = vmul.f32 %v651, %v653
  %v658 = vperm.slane %v607, 0
  %v660 = vadd.f32 %v655, %v658
  %v661 = vadd.f32 %v656, %v658
  %v662 = vpack.c.bf16 %v661, %v660
  %v663 = vld [vmem:[%s13] sm:$0xf]
  %v664 = vld [vmem:[%s13 + $0x4] sm:$0xf]
  %v665 = vld [vmem:[%s13 + $0x8] sm:$0xf]
  %v666 = vld [vmem:[%s13 + $0xc] sm:$0xf]
  %v667 = vld [vmem:[%s14] sm:$0x1]
  %v669 = vperm.slane %v667, 0
  %v675 = vunpack.c.l.b16 %v663
  %v676 = vunpack.c.l.b16 %v664
  %v677 = vunpack.c.l.b16 %v665
  %v678 = vunpack.c.l.b16 %v666
  %v679 = vpack.c.b16 %v676, %v675
  %v680 = vpack.c.b16 %v678, %v677
  %v684 = vsel %vm128, %v662, 0
  %686 = vmatpush.bf16.msra.mxu0 0
  %687 = vmatpush.bf16.msra.mxu0 0
  %688 = vmatpush.bf16.msra.mxu0 0
  %689 = vmatpush.bf16.msra.mxu0 0
  %690 = vmatpush.bf16.msra.mxu0 0
  %691 = vmatpush.bf16.msra.mxu0 0
  %692 = vmatpush.bf16.msra.mxu0 %v680
  %693 = vmatpush.bf16.msra.mxu0 %v679
  %694 = vmatmul.bf16.gmra.mxu0 %v684
  %v695 = vpop.f32.mrf.mxu0
  %v696 = vadd.f32 %v669, %v695
  %v697 = vpop.f32.mrf.mxu0
  %v698 = vadd.f32 %v669, %v697
  %699 = vdwg.mxu0
  %v700 = vmul.f32 %v696, 0.5
  %v701 = vmul.f32 %v698, 0.5
  %v702 = vmul.f32 %v696, 0.044715
  %v703 = vmul.f32 %v698, 0.044715
  %v704 = vmul.f32 %v702, %v696
  %v705 = vmul.f32 %v703, %v698
  %v706 = vmul.f32 %v704, %v696
  %v707 = vmul.f32 %v705, %v698
  %v708 = vadd.f32 %v696, %v706
  %v709 = vadd.f32 %v698, %v707
  %v710 = vmul.f32 %v708, 0.7978846
  %v711 = vmul.f32 %v709, 0.7978846
  %v712 = vtanh.pop %v710
  %v713 = vtanh.pop %v711
  %v714 = vadd.f32 %v712, 1.0
  %v715 = vadd.f32 %v713, 1.0
  %v716 = vmul.f32 %v700, %v714
  %v717 = vmul.f32 %v701, %v715
  %v718 = vpack.c.bf16 %v717, %v716
  %v719 = vld [vmem:[%s15] sm:$0xf]
  %v720 = vld [vmem:[%s15 + $0x4] sm:$0xf]
  %v721 = vld [vmem:[%s15 + $0x8] sm:$0xf]
  %v722 = vld [vmem:[%s15 + $0xc] sm:$0xf]
  %v723 = vld [vmem:[%s15 + $0x10] sm:$0xf]
  %v724 = vld [vmem:[%s15 + $0x14] sm:$0xf]
  %v725 = vld [vmem:[%s15 + $0x18] sm:$0xf]
  %v726 = vld [vmem:[%s15 + $0x1c] sm:$0xf]
  %v727 = vld [vmem:[%s16] sm:$0x1]
  %v729 = vperm.slane %v727, 0
  %v739 = vunpack.c.l.b16 %v719
  %v740 = vunpack.c.l.b16 %v720
  %v741 = vunpack.c.l.b16 %v721
  %v742 = vunpack.c.l.b16 %v722
  %v743 = vunpack.c.l.b16 %v723
  %v744 = vunpack.c.l.b16 %v724
  %v745 = vunpack.c.l.b16 %v725
  %v746 = vunpack.c.l.b16 %v726
  %v747 = vpack.c.b16 %v740, %v739
  %v748 = vpack.c.b16 %v742, %v741
  %v749 = vpack.c.b16 %v744, %v743
  %v750 = vpack.c.b16 %v746, %v745
  %vm755 = vcmask 523264
  %v757 = vsel %vm755, %v718, 0
  %759 = vmatpush.bf16.msra.mxu0 0
  %760 = vmatpush.bf16.msra.mxu0 0
  %761 = vmatpush.bf16.msra.mxu0 0
  %762 = vmatpush.bf16.msra.mxu0 0
  %763 = vmatpush.bf16.msra.mxu0 %v750
  %764 = vmatpush.bf16.msra.mxu0 %v749
  %765 = vmatpush.bf16.msra.mxu0 %v748
  %766 = vmatpush.bf16.msra.mxu0 %v747
  %767 = vmatmul.bf16.gmra.mxu0 %v757
  %v768 = vpop.f32.mrf.mxu0
  %v769 = vadd.f32 %v729, %v768
  %v770 = vpop.f32.mrf.mxu0
  %v771 = vadd.f32 %v729, %v770
  %772 = vdwg.mxu0
  %v773 = vadd.f32 %v660, %v769
  %v774 = vadd.f32 %v661, %v771
  %v775 = vld [vmem:[%s17] sm:$0x1]
  %v776 = vld [vmem:[%s18] sm:$0x1]
  %v777 = vsel %vm128, %v773, 0.0
  %778 = vadd.xlane.f32.xlu0 %v777
  %v779 = vpop.xlane.xlu0 %778
  %v780 = vsel %vm128, %v774, 0.0
  %781 = vadd.xlane.f32.xlu0 %v780
  %v782 = vpop.xlane.xlu0 %781
  %v783 = vmul.f32 %v779, %v141
  %v784 = vmul.f32 %v782, %v141
  %v785 = vsub.f32 %v773, %v783
  %v786 = vsub.f32 %v774, %v784
  %v787 = vmul.f32 %v785, %v785
  %v788 = vmul.f32 %v786, %v786
  %v789 = vsel %vm128, %v787, 0.0
  %790 = vadd.xlane.f32.xlu0 %v789
  %v791 = vpop.xlane.xlu0 %790
  %v792 = vsel %vm128, %v788, 0.0
  %793 = vadd.xlane.f32.xlu0 %v792
  %v794 = vpop.xlane.xlu0 %793
  %v795 = vmul.f32 %v791, %v141
  %v796 = vmul.f32 %v794, %v141
  %v797 = vadd.f32 %v795, 1e-12
  %v798 = vadd.f32 %v796, 1e-12
  %v799 = vrsqrt.pop %v797
  %v800 = vmul.f32 %v799, %v797
  %v801 = vmul.f32 %v800, %v799
  %v802 = vmul.f32 0.5, %v801
  %v803 = vsub.f32 1.5, %v802
  %v804 = vmul.f32 %v799, %v803
  %vm805 = vweird.f32 %v797
  %vm806 = vweird.f32 %v799
  %vm807 = vmor %vm805, %vm806
  %v808 = vsel %vm807, %v799, %v804
  %v809 = vrsqrt.pop %v798
  %v810 = vmul.f32 %v809, %v798
  %v811 = vmul.f32 %v810, %v809
  %v812 = vmul.f32 0.5, %v811
  %v813 = vsub.f32 1.5, %v812
  %v814 = vmul.f32 %v809, %v813
  %vm815 = vweird.f32 %v798
  %vm816 = vweird.f32 %v809
  %vm817 = vmor %vm815, %vm816
  %v818 = vsel %vm817, %v809, %v814
  %v819 = vmul.f32 %v785, %v808
  %v820 = vmul.f32 %v786, %v818
  %v822 = vperm.slane %v775, 0
  %v824 = vmul.f32 %v819, %v822
  %v825 = vmul.f32 %v820, %v822
  %v827 = vperm.slane %v776, 0
  %v829 = vadd.f32 %v824, %v827
  %v830 = vadd.f32 %v825, %v827
  %v831 = vpack.c.bf16 %v830, %v829
  %s832 = scalar_lea.vmem %s7, 96
  %v833 = vld [vmem:[%s832] sm:$0xf]
  %v834 = vld [vmem:[%s832 + $0x4] sm:$0xf]
  %v835 = vld [vmem:[%s832 + $0x8] sm:$0xf]
  %v836 = vld [vmem:[%s832 + $0xc] sm:$0xf]
  %s837 = scalar_lea.vmem %s8, 6
  %v838 = vld [vmem:[%s837] sm:$0x1]
  %v840 = vperm.slane %v838, 0
  %v846 = vunpack.c.l.b16 %v833
  %v847 = vunpack.c.l.b16 %v834
  %v848 = vunpack.c.l.b16 %v835
  %v849 = vunpack.c.l.b16 %v836
  %v850 = vpack.c.b16 %v847, %v846
  %v851 = vpack.c.b16 %v849, %v848
  %v855 = vsel %vm128, %v831, 0
  %857 = vmatpush.bf16.msra.mxu0 0
  %858 = vmatpush.bf16.msra.mxu0 0
  %859 = vmatpush.bf16.msra.mxu0 0
  %860 = vmatpush.bf16.msra.mxu0 0
  %861 = vmatpush.bf16.msra.mxu0 0
  %862 = vmatpush.bf16.msra.mxu0 0
  %863 = vmatpush.bf16.msra.mxu0 %v851
  %864 = vmatpush.bf16.msra.mxu0 %v850
  %865 = vmatmul.bf16.gmra.mxu0 %v855
  %v866 = vpop.f32.mrf.mxu0
  %v867 = vadd.f32 %v840, %v866
  %v868 = vpop.f32.mrf.mxu0
  %v869 = vadd.f32 %v840, %v868
  %870 = vdwg.mxu0
  %s871 = scalar_lea.vmem %s7, 112
  %v872 = vld [vmem:[%s871] sm:$0xf]
  %v873 = vld [vmem:[%s871 + $0x4] sm:$0xf]
  %v874 = vld [vmem:[%s871 + $0x8] sm:$0xf]
  %v875 = vld [vmem:[%s871 + $0xc] sm:$0xf]
  %s876 = scalar_lea.vmem %s8, 7
  %v877 = vld [vmem:[%s876] sm:$0x1]
  %v879 = vperm.slane %v877, 0
  %v885 = vunpack.c.l.b16 %v872
  %v886 = vunpack.c.l.b16 %v873
  %v887 = vunpack.c.l.b16 %v874
  %v888 = vunpack.c.l.b16 %v875
  %v889 = vpack.c.b16 %v886, %v885
  %v890 = vpack.c.b16 %v888, %v887
  %893 = vmatpush.bf16.msra.mxu0 0
  %894 = vmatpush.bf16.msra.mxu0 0
  %895 = vmatpush.bf16.msra.mxu0 0
  %896 = vmatpush.bf16.msra.mxu0 0
  %897 = vmatpush.bf16.msra.mxu0 0
  %898 = vmatpush.bf16.msra.mxu0 0
  %899 = vmatpush.bf16.msra.mxu0 %v890
  %900 = vmatpush.bf16.msra.mxu0 %v889
  %901 = vmatmul.bf16.gmra.mxu0 %v855
  %v902 = vpop.f32.mrf.mxu0
  %v903 = vadd.f32 %v879, %v902
  %v904 = vpop.f32.mrf.mxu0
  %v905 = vadd.f32 %v879, %v904
  %906 = vdwg.mxu0
  %s907 = scalar_lea.vmem %s7, 128
  %v908 = vld [vmem:[%s907] sm:$0xf]
  %v909 = vld [vmem:[%s907 + $0x4] sm:$0xf]
  %v910 = vld [vmem:[%s907 + $0x8] sm:$0xf]
  %v911 = vld [vmem:[%s907 + $0xc] sm:$0xf]
  %s912 = scalar_lea.vmem %s8, 8
  %v913 = vld [vmem:[%s912] sm:$0x1]
  %v915 = vperm.slane %v913, 0
  %v921 = vunpack.c.l.b16 %v908
  %v922 = vunpack.c.l.b16 %v909
  %v923 = vunpack.c.l.b16 %v910
  %v924 = vunpack.c.l.b16 %v911
  %v925 = vpack.c.b16 %v922, %v921
  %v926 = vpack.c.b16 %v924, %v923
  %929 = vmatpush.bf16.msra.mxu0 0
  %930 = vmatpush.bf16.msra.mxu0 0
  %931 = vmatpush.bf16.msra.mxu0 0
  %932 = vmatpush.bf16.msra.mxu0 0
  %933 = vmatpush.bf16.msra.mxu0 0
  %934 = vmatpush.bf16.msra.mxu0 0
  %935 = vmatpush.bf16.msra.mxu0 %v926
  %936 = vmatpush.bf16.msra.mxu0 %v925
  %937 = vmatmul.bf16.gmra.mxu0 %v855
  %v938 = vpop.f32.mrf.mxu0
  %v939 = vadd.f32 %v915, %v938
  %v940 = vpop.f32.mrf.mxu0
  %v941 = vadd.f32 %v915, %v940
  %942 = vdwg.mxu0
  %v943 = vpack.c.bf16 %v869, %v867
  %v944 = vpack.c.bf16 %v905, %v903
  %v946 = vsel %vm304, %v943, 0
  %v949 = vsel %vm304, %v944, 0
  %951 = vmatpush.bf16.xpose.msra.mxu0 0
  %952 = vmatpush.bf16.xpose.msra.mxu0 0
  %953 = vmatpush.bf16.xpose.msra.mxu0 0
  %954 = vmatpush.bf16.xpose.msra.mxu0 0
  %955 = vmatpush.bf16.xpose.msra.mxu0 0
  %956 = vmatpush.bf16.xpose.msra.mxu0 0
  %957 = vmatpush.bf16.xpose.msra.mxu0 0
  %958 = vmatpush.bf16.xpose.msra.mxu0 %v949
  %959 = vmatmul.bf16.gmra.mxu0 %v946
  %v960 = vpop.f32.mrf.mxu0
  %v961 = vadd.f32 0.0, %v960
  %v962 = vpop.f32.mrf.mxu0
  %v963 = vadd.f32 0.0, %v962
  %964 = vdwg.mxu0
  %v965 = vmul.f32 %v961, 0.25
  %v966 = vmul.f32 %v963, 0.25
  %v967 = vadd.f32 %v965, %v190
  %v968 = vadd.f32 %v966, %v191
  %v969 = vsel %vm304, %v967, -inf
  %970 = vmax.xlane.f32.xlu0 %v969
  %v971 = vpop.xlane.xlu0 %970
  %v972 = vsel %vm304, %v968, -inf
  %973 = vmax.xlane.f32.xlu0 %v972
  %v974 = vpop.xlane.xlu0 %973
  %v975 = vsub.f32 %v967, %v971
  %v976 = vsub.f32 %v968, %v974
  %v977 = vmul.f32 %v975, 1.442695
  %v978 = vpow.pop %v977
  %v979 = vmul.f32 %v976, 1.442695
  %v980 = vpow.pop %v979
  %v981 = vsel %vm304, %v978, 0.0
  %982 = vadd.xlane.f32.xlu0 %v981
  %v983 = vpop.xlane.xlu0 %982
  %v984 = vsel %vm304, %v980, 0.0
  %985 = vadd.xlane.f32.xlu0 %v984
  %v986 = vpop.xlane.xlu0 %985
  %v987 = vrcp.pop %v983
  %v988 = vrcp.pop %v986
  %v989 = vmul.f32 %v978, %v987
  %v990 = vmul.f32 %v980, %v988
  %v991 = vpack.c.bf16 %v990, %v989
  %v992 = vpack.c.bf16 %v941, %v939
  %v994 = vsel %vm304, %v991, 0
  %996 = vmatpush.bf16.msra.mxu0 0
  %997 = vmatpush.bf16.msra.mxu0 0
  %998 = vmatpush.bf16.msra.mxu0 0
  %999 = vmatpush.bf16.msra.mxu0 0
  %1000 = vmatpush.bf16.msra.mxu0 0
  %1001 = vmatpush.bf16.msra.mxu0 0
  %1002 = vmatpush.bf16.msra.mxu0 0
  %1003 = vmatpush.bf16.msra.mxu0 %v992
  %1004 = vmatmul.bf16.gmra.mxu0 %v994
  %v1005 = vpop.f32.mrf.mxu0
  %v1006 = vadd.f32 0.0, %v1005
  %v1007 = vpop.f32.mrf.mxu0
  %v1008 = vadd.f32 0.0, %v1007
  %1009 = vdwg.mxu0
  %v1010 = vpack.c.bf16 %v1008, %v1006
  %s1011 = scalar_lea.vmem %s9, 16
  %v1012 = vld [vmem:[%s1011] sm:$0xf]
  %v1013 = vld [vmem:[%s1011 + $0x4] sm:$0xf]
  %s1014 = scalar_lea.vmem %s7, 144
  %v1015 = vld [vmem:[%s1014] sm:$0xf]
  %v1016 = vld [vmem:[%s1014 + $0x4] sm:$0xf]
  %v1017 = vld [vmem:[%s1014 + $0x8] sm:$0xf]
  %v1018 = vld [vmem:[%s1014 + $0xc] sm:$0xf]
  %s1019 = scalar_lea.vmem %s8, 9
  %v1020 = vld [vmem:[%s1019] sm:$0x1]
  %v1022 = vperm.slane %v1020, 0
  %v1028 = vunpack.c.l.b16 %v1015
  %v1029 = vunpack.c.l.b16 %v1016
  %v1030 = vunpack.c.l.b16 %v1017
  %v1031 = vunpack.c.l.b16 %v1018
  %v1032 = vpack.c.b16 %v1029, %v1028
  %v1033 = vpack.c.b16 %v1031, %v1030
  %1036 = vmatpush.bf16.msra.mxu0 0
  %1037 = vmatpush.bf16.msra.mxu0 0
  %1038 = vmatpush.bf16.msra.mxu0 0
  %1039 = vmatpush.bf16.msra.mxu0 0
  %1040 = vmatpush.bf16.msra.mxu0 0
  %1041 = vmatpush.bf16.msra.mxu0 0
  %1042 = vmatpush.bf16.msra.mxu0 %v1033
  %1043 = vmatpush.bf16.msra.mxu0 %v1032
  %1044 = vmatmul.bf16.gmra.mxu0 %v855
  %v1045 = vpop.f32.mrf.mxu0
  %v1046 = vadd.f32 %v1022, %v1045
  %v1047 = vpop.f32.mrf.mxu0
  %v1048 = vadd.f32 %v1022, %v1047
  %1049 = vdwg.mxu0
  %s1050 = scalar_lea.vmem %s7, 160
  %v1051 = vld [vmem:[%s1050] sm:$0xf]
  %v1052 = vld [vmem:[%s1050 + $0x4] sm:$0xf]
  %v1053 = vld [vmem:[%s1050 + $0x8] sm:$0xf]
  %v1054 = vld [vmem:[%s1050 + $0xc] sm:$0xf]
  %s1055 = scalar_lea.vmem %s8, 10
  %v1056 = vld [vmem:[%s1055] sm:$0x1]
  %v1058 = vperm.slane %v1056, 0
  %v1064 = vunpack.c.l.b16 %v1051
  %v1065 = vunpack.c.l.b16 %v1052
  %v1066 = vunpack.c.l.b16 %v1053
  %v1067 = vunpack.c.l.b16 %v1054
  %v1068 = vpack.c.b16 %v1065, %v1064
  %v1069 = vpack.c.b16 %v1067, %v1066
  %1072 = vmatpush.bf16.msra.mxu0 0
  %1073 = vmatpush.bf16.msra.mxu0 0
  %1074 = vmatpush.bf16.msra.mxu0 0
  %1075 = vmatpush.bf16.msra.mxu0 0
  %1076 = vmatpush.bf16.msra.mxu0 0
  %1077 = vmatpush.bf16.msra.mxu0 0
  %1078 = vmatpush.bf16.msra.mxu0 %v1069
  %1079 = vmatpush.bf16.msra.mxu0 %v1068
  %1080 = vmatmul.bf16.gmra.mxu0 %v855
  %v1081 = vpop.f32.mrf.mxu0
  %v1082 = vadd.f32 %v1058, %v1081
  %v1083 = vpop.f32.mrf.mxu0
  %v1084 = vadd.f32 %v1058, %v1083
  %1085 = vdwg.mxu0
  %s1086 = scalar_lea.vmem %s7, 176
  %v1087 = vld [vmem:[%s1086] sm:$0xf]
  %v1088 = vld [vmem:[%s1086 + $0x4] sm:$0xf]
  %v1089 = vld [vmem:[%s1086 + $0x8] sm:$0xf]
  %v1090 = vld [vmem:[%s1086 + $0xc] sm:$0xf]
  %s1091 = scalar_lea.vmem %s8, 11
  %v1092 = vld [vmem:[%s1091] sm:$0x1]
  %v1094 = vperm.slane %v1092, 0
  %v1100 = vunpack.c.l.b16 %v1087
  %v1101 = vunpack.c.l.b16 %v1088
  %v1102 = vunpack.c.l.b16 %v1089
  %v1103 = vunpack.c.l.b16 %v1090
  %v1104 = vpack.c.b16 %v1101, %v1100
  %v1105 = vpack.c.b16 %v1103, %v1102
  %1108 = vmatpush.bf16.msra.mxu0 0
  %1109 = vmatpush.bf16.msra.mxu0 0
  %1110 = vmatpush.bf16.msra.mxu0 0
  %1111 = vmatpush.bf16.msra.mxu0 0
  %1112 = vmatpush.bf16.msra.mxu0 0
  %1113 = vmatpush.bf16.msra.mxu0 0
  %1114 = vmatpush.bf16.msra.mxu0 %v1105
  %1115 = vmatpush.bf16.msra.mxu0 %v1104
  %1116 = vmatmul.bf16.gmra.mxu0 %v855
  %v1117 = vpop.f32.mrf.mxu0
  %v1118 = vadd.f32 %v1094, %v1117
  %v1119 = vpop.f32.mrf.mxu0
  %v1120 = vadd.f32 %v1094, %v1119
  %1121 = vdwg.mxu0
  %v1122 = vpack.c.bf16 %v1048, %v1046
  %v1123 = vpack.c.bf16 %v1084, %v1082
  %v1125 = vsel %vm304, %v1122, 0
  %v1128 = vsel %vm304, %v1123, 0
  %1130 = vmatpush.bf16.xpose.msra.mxu0 0
  %1131 = vmatpush.bf16.xpose.msra.mxu0 0
  %1132 = vmatpush.bf16.xpose.msra.mxu0 0
  %1133 = vmatpush.bf16.xpose.msra.mxu0 0
  %1134 = vmatpush.bf16.xpose.msra.mxu0 0
  %1135 = vmatpush.bf16.xpose.msra.mxu0 0
  %1136 = vmatpush.bf16.xpose.msra.mxu0 0
  %1137 = vmatpush.bf16.xpose.msra.mxu0 %v1128
  %1138 = vmatmul.bf16.gmra.mxu0 %v1125
  %v1139 = vpop.f32.mrf.mxu0
  %v1140 = vadd.f32 0.0, %v1139
  %v1141 = vpop.f32.mrf.mxu0
  %v1142 = vadd.f32 0.0, %v1141
  %1143 = vdwg.mxu0
  %v1144 = vmul.f32 %v1140, 0.25
  %v1145 = vmul.f32 %v1142, 0.25
  %v1146 = vadd.f32 %v1144, %v190
  %v1147 = vadd.f32 %v1145, %v191
  %v1148 = vsel %vm304, %v1146, -inf
  %1149 = vmax.xlane.f32.xlu0 %v1148
  %v1150 = vpop.xlane.xlu0 %1149
  %v1151 = vsel %vm304, %v1147, -inf
  %1152 = vmax.xlane.f32.xlu0 %v1151
  %v1153 = vpop.xlane.xlu0 %1152
  %v1154 = vsub.f32 %v1146, %v1150
  %v1155 = vsub.f32 %v1147, %v1153
  %v1156 = vmul.f32 %v1154, 1.442695
  %v1157 = vpow.pop %v1156
  %v1158 = vmul.f32 %v1155, 1.442695
  %v1159 = vpow.pop %v1158
  %v1160 = vsel %vm304, %v1157, 0.0
  %1161 = vadd.xlane.f32.xlu0 %v1160
  %v1162 = vpop.xlane.xlu0 %1161
  %v1163 = vsel %vm304, %v1159, 0.0
  %1164 = vadd.xlane.f32.xlu0 %v1163
  %v1165 = vpop.xlane.xlu0 %1164
  %v1166 = vrcp.pop %v1162
  %v1167 = vrcp.pop %v1165
  %v1168 = vmul.f32 %v1157, %v1166
  %v1169 = vmul.f32 %v1159, %v1167
  %v1170 = vpack.c.bf16 %v1169, %v1168
  %v1171 = vpack.c.bf16 %v1120, %v1118
  %v1173 = vsel %vm304, %v1170, 0
  %1175 = vmatpush.bf16.msra.mxu0 0
  %1176 = vmatpush.bf16.msra.mxu0 0
  %1177 = vmatpush.bf16.msra.mxu0 0
  %1178 = vmatpush.bf16.msra.mxu0 0
  %1179 = vmatpush.bf16.msra.mxu0 0
  %1180 = vmatpush.bf16.msra.mxu0 0
  %1181 = vmatpush.bf16.msra.mxu0 0
  %1182 = vmatpush.bf16.msra.mxu0 %v1171
  %1183 = vmatmul.bf16.gmra.mxu0 %v1173
  %v1184 = vpop.f32.mrf.mxu0
  %v1185 = vadd.f32 0.0, %v1184
  %v1186 = vpop.f32.mrf.mxu0
  %v1187 = vadd.f32 0.0, %v1186
  %1188 = vdwg.mxu0
  %v1189 = vpack.c.bf16 %v1187, %v1185
  %s1190 = scalar_lea.vmem %s9, 24
  %v1191 = vld [vmem:[%s1190] sm:$0xf]
  %v1192 = vld [vmem:[%s1190 + $0x4] sm:$0xf]
  %v1195 = vunpack.c.l.b16 %v1191
  %v1196 = vunpack.c.l.b16 %v1192
  %v1197 = vpack.c.b16 %v1196, %v1195
  %v1200 = vsel %vm304, %v1189, 0
  %1202 = vmatpush.bf16.msra.mxu0 0
  %1203 = vmatpush.bf16.msra.mxu0 0
  %1204 = vmatpush.bf16.msra.mxu0 0
  %1205 = vmatpush.bf16.msra.mxu0 0
  %1206 = vmatpush.bf16.msra.mxu0 0
  %1207 = vmatpush.bf16.msra.mxu0 0
  %1208 = vmatpush.bf16.msra.mxu0 0
  %1209 = vmatpush.bf16.msra.mxu0 %v1197
  %1210 = vmatmul.bf16.gmra.mxu0 %v1200
  %v1211 = vpop.f32.mrf.mxu0
  %v1212 = vadd.f32 0.0, %v1211
  %v1213 = vpop.f32.mrf.mxu0
  %v1214 = vadd.f32 0.0, %v1213
  %1215 = vdwg.mxu0
  %v1218 = vunpack.c.l.b16 %v1012
  %v1219 = vunpack.c.l.b16 %v1013
  %v1220 = vpack.c.b16 %v1219, %v1218
  %v1223 = vsel %vm304, %v1010, 0
  %1225 = vmatpush.bf16.msra.mxu0 0
  %1226 = vmatpush.bf16.msra.mxu0 0
  %1227 = vmatpush.bf16.msra.mxu0 0
  %1228 = vmatpush.bf16.msra.mxu0 0
  %1229 = vmatpush.bf16.msra.mxu0 0
  %1230 = vmatpush.bf16.msra.mxu0 0
  %1231 = vmatpush.bf16.msra.mxu0 0
  %1232 = vmatpush.bf16.msra.mxu0 %v1220
  %1233 = vmatmul.bf16.gmra.mxu0 %v1223
  %v1234 = vpop.f32.mrf.mxu0
  %v1235 = vadd.f32 %v1212, %v1234
  %v1236 = vpop.f32.mrf.mxu0
  %v1237 = vadd.f32 %v1214, %v1236
  %1238 = vdwg.mxu0
  %v1239 = vadd.f32 %v829, %v1235
  %v1240 = vadd.f32 %v830, %v1237
  %s1241 = scalar_lea.vmem %s10, 1
  %v1242 = vld [vmem:[%s1241] sm:$0x1]
  %v1244 = vperm.slane %v1242, 0
  %v1246 = vadd.f32 %v1239, %v1244
  %v1247 = vadd.f32 %v1240, %v1244
  %s1248 = scalar_lea.vmem %s11, 1
  %v1249 = vld [vmem:[%s1248] sm:$0x1]
  %s1250 = scalar_lea.vmem %s12, 1
  %v1251 = vld [vmem:[%s1250] sm:$0x1]
  %v1252 = vsel %vm128, %v1246, 0.0
  %1253 = vadd.xlane.f32.xlu0 %v1252
  %v1254 = vpop.xlane.xlu0 %1253
  %v1255 = vsel %vm128, %v1247, 0.0
  %1256 = vadd.xlane.f32.xlu0 %v1255
  %v1257 = vpop.xlane.xlu0 %1256
  %v1258 = vmul.f32 %v1254, %v141
  %v1259 = vmul.f32 %v1257, %v141
  %v1260 = vsub.f32 %v1246, %v1258
  %v1261 = vsub.f32 %v1247, %v1259
  %v1262 = vmul.f32 %v1260, %v1260
  %v1263 = vmul.f32 %v1261, %v1261
  %v1264 = vsel %vm128, %v1262, 0.0
  %1265 = vadd.xlane.f32.xlu0 %v1264
  %v1266 = vpop.xlane.xlu0 %1265
  %v1267 = vsel %vm128, %v1263, 0.0
  %1268 = vadd.xlane.f32.xlu0 %v1267
  %v1269 = vpop.xlane.xlu0 %1268
  %v1270 = vmul.f32 %v1266, %v141
  %v1271 = vmul.f32 %v1269, %v141
  %v1272 = vadd.f32 %v1270, 1e-12
  %v1273 = vadd.f32 %v1271, 1e-12
  %v1274 = vrsqrt.pop %v1272
  %v1275 = vmul.f32 %v1274, %v1272
  %v1276 = vmul.f32 %v1275, %v1274
  %v1277 = vmul.f32 0.5, %v1276
  %v1278 = vsub.f32 1.5, %v1277
  %v1279 = vmul.f32 %v1274, %v1278
  %vm1280 = vweird.f32 %v1272
  %vm1281 = vweird.f32 %v1274
  %vm1282 = vmor %vm1280, %vm1281
  %v1283 = vsel %vm1282, %v1274, %v1279
  %v1284 = vrsqrt.pop %v1273
  %v1285 = vmul.f32 %v1284, %v1273
  %v1286 = vmul.f32 %v1285, %v1284
  %v1287 = vmul.f32 0.5, %v1286
  %v1288 = vsub.f32 1.5, %v1287
  %v1289 = vmul.f32 %v1284, %v1288
  %vm1290 = vweird.f32 %v1273
  %vm1291 = vweird.f32 %v1284
  %vm1292 = vmor %vm1290, %vm1291
  %v1293 = vsel %vm1292, %v1284, %v1289
  %v1294 = vmul.f32 %v1260, %v1283
  %v1295 = vmul.f32 %v1261, %v1293
  %v1297 = vperm.slane %v1249, 0
  %v1299 = vmul.f32 %v1294, %v1297
  %v1300 = vmul.f32 %v1295, %v1297
  %v1302 = vperm.slane %v1251, 0
  %v1304 = vadd.f32 %v1299, %v1302
  %v1305 = vadd.f32 %v1300, %v1302
  %v1306 = vpack.c.bf16 %v1305, %v1304
  %s1307 = scalar_lea.vmem %s13, 16
  %v1308 = vld [vmem:[%s1307] sm:$0xf]
  %v1309 = vld [vmem:[%s1307 + $0x4] sm:$0xf]
  %v1310 = vld [vmem:[%s1307 + $0x8] sm:$0xf]
  %v1311 = vld [vmem:[%s1307 + $0xc] sm:$0xf]
  %s1312 = scalar_lea.vmem %s14, 1
  %v1313 = vld [vmem:[%s1312] sm:$0x1]
  %v1315 = vperm.slane %v1313, 0
  %v1321 = vunpack.c.l.b16 %v1308
  %v1322 = vunpack.c.l.b16 %v1309
  %v1323 = vunpack.c.l.b16 %v1310
  %v1324 = vunpack.c.l.b16 %v1311
  %v1325 = vpack.c.b16 %v1322, %v1321
  %v1326 = vpack.c.b16 %v1324, %v1323
  %v1330 = vsel %vm128, %v1306, 0
  %1332 = vmatpush.bf16.msra.mxu0 0
  %1333 = vmatpush.bf16.msra.mxu0 0
  %1334 = vmatpush.bf16.msra.mxu0 0
  %1335 = vmatpush.bf16.msra.mxu0 0
  %1336 = vmatpush.bf16.msra.mxu0 0
  %1337 = vmatpush.bf16.msra.mxu0 0
  %1338 = vmatpush.bf16.msra.mxu0 %v1326
  %1339 = vmatpush.bf16.msra.mxu0 %v1325
  %1340 = vmatmul.bf16.gmra.mxu0 %v1330
  %v1341 = vpop.f32.mrf.mxu0
  %v1342 = vadd.f32 %v1315, %v1341
  %v1343 = vpop.f32.mrf.mxu0
  %v1344 = vadd.f32 %v1315, %v1343
  %1345 = vdwg.mxu0
  %v1346 = vmul.f32 %v1342, 0.5
  %v1347 = vmul.f32 %v1344, 0.5
  %v1348 = vmul.f32 %v1342, 0.044715
  %v1349 = vmul.f32 %v1344, 0.044715
  %v1350 = vmul.f32 %v1348, %v1342
  %v1351 = vmul.f32 %v1349, %v1344
  %v1352 = vmul.f32 %v1350, %v1342
  %v1353 = vmul.f32 %v1351, %v1344
  %v1354 = vadd.f32 %v1342, %v1352
  %v1355 = vadd.f32 %v1344, %v1353
  %v1356 = vmul.f32 %v1354, 0.7978846
  %v1357 = vmul.f32 %v1355, 0.7978846
  %v1358 = vtanh.pop %v1356
  %v1359 = vtanh.pop %v1357
  %v1360 = vadd.f32 %v1358, 1.0
  %v1361 = vadd.f32 %v1359, 1.0
  %v1362 = vmul.f32 %v1346, %v1360
  %v1363 = vmul.f32 %v1347, %v1361
  %v1364 = vpack.c.bf16 %v1363, %v1362
  %s1365 = scalar_lea.vmem %s15, 32
  %v1366 = vld [vmem:[%s1365] sm:$0xf]
  %v1367 = vld [vmem:[%s1365 + $0x4] sm:$0xf]
  %v1368 = vld [vmem:[%s1365 + $0x8] sm:$0xf]
  %v1369 = vld [vmem:[%s1365 + $0xc] sm:$0xf]
  %v1370 = vld [vmem:[%s1365 + $0x10] sm:$0xf]
  %v1371 = vld [vmem:[%s1365 + $0x14] sm:$0xf]
  %v1372 = vld [vmem:[%s1365 + $0x18] sm:$0xf]
  %v1373 = vld [vmem:[%s1365 + $0x1c] sm:$0xf]
  %s1374 = scalar_lea.vmem %s16, 1
  %v1375 = vld [vmem:[%s1374] sm:$0x1]
  %v1377 = vperm.slane %v1375, 0
  %v1387 = vunpack.c.l.b16 %v1366
  %v1388 = vunpack.c.l.b16 %v1367
  %v1389 = vunpack.c.l.b16 %v1368
  %v1390 = vunpack.c.l.b16 %v1369
  %v1391 = vunpack.c.l.b16 %v1370
  %v1392 = vunpack.c.l.b16 %v1371
  %v1393 = vunpack.c.l.b16 %v1372
  %v1394 = vunpack.c.l.b16 %v1373
  %v1395 = vpack.c.b16 %v1388, %v1387
  %v1396 = vpack.c.b16 %v1390, %v1389
  %v1397 = vpack.c.b16 %v1392, %v1391
  %v1398 = vpack.c.b16 %v1394, %v1393
  %v1404 = vsel %vm755, %v1364, 0
  %1406 = vmatpush.bf16.msra.mxu0 0
  %1407 = vmatpush.bf16.msra.mxu0 0
  %1408 = vmatpush.bf16.msra.mxu0 0
  %1409 = vmatpush.bf16.msra.mxu0 0
  %1410 = vmatpush.bf16.msra.mxu0 %v1398
  %1411 = vmatpush.bf16.msra.mxu0 %v1397
  %1412 = vmatpush.bf16.msra.mxu0 %v1396
  %1413 = vmatpush.bf16.msra.mxu0 %v1395
  %1414 = vmatmul.bf16.gmra.mxu0 %v1404
  %v1415 = vpop.f32.mrf.mxu0
  %v1416 = vadd.f32 %v1377, %v1415
  %v1417 = vpop.f32.mrf.mxu0
  %v1418 = vadd.f32 %v1377, %v1417
  %1419 = vdwg.mxu0
  %v1420 = vadd.f32 %v1304, %v1416
  %v1421 = vadd.f32 %v1305, %v1418
  %s1422 = scalar_lea.vmem %s17, 1
  %v1423 = vld [vmem:[%s1422] sm:$0x1]
  %s1424 = scalar_lea.vmem %s18, 1
  %v1425 = vld [vmem:[%s1424] sm:$0x1]
  %v1426 = vsel %vm128, %v1420, 0.0
  %1427 = vadd.xlane.f32.xlu0 %v1426
  %v1428 = vpop.xlane.xlu0 %1427
  %v1429 = vsel %vm128, %v1421, 0.0
  %1430 = vadd.xlane.f32.xlu0 %v1429
  %v1431 = vpop.xlane.xlu0 %1430
  %v1432 = vmul.f32 %v1428, %v141
  %v1433 = vmul.f32 %v1431, %v141
  %v1434 = vsub.f32 %v1420, %v1432
  %v1435 = vsub.f32 %v1421, %v1433
  %v1436 = vmul.f32 %v1434, %v1434
  %v1437 = vmul.f32 %v1435, %v1435
  %v1438 = vsel %vm128, %v1436, 0.0
  %1439 = vadd.xlane.f32.xlu0 %v1438
  %v1440 = vpop.xlane.xlu0 %1439
  %v1441 = vsel %vm128, %v1437, 0.0
  %1442 = vadd.xlane.f32.xlu0 %v1441
  %v1443 = vpop.xlane.xlu0 %1442
  %v1444 = vmul.f32 %v1440, %v141
  %v1445 = vmul.f32 %v1443, %v141
  %v1446 = vadd.f32 %v1444, 1e-12
  %v1447 = vadd.f32 %v1445, 1e-12
  %v1448 = vrsqrt.pop %v1446
  %v1449 = vmul.f32 %v1448, %v1446
  %v1450 = vmul.f32 %v1449, %v1448
  %v1451 = vmul.f32 0.5, %v1450
  %v1452 = vsub.f32 1.5, %v1451
  %v1453 = vmul.f32 %v1448, %v1452
  %vm1454 = vweird.f32 %v1446
  %vm1455 = vweird.f32 %v1448
  %vm1456 = vmor %vm1454, %vm1455
  %v1457 = vsel %vm1456, %v1448, %v1453
  %v1458 = vrsqrt.pop %v1447
  %v1459 = vmul.f32 %v1458, %v1447
  %v1460 = vmul.f32 %v1459, %v1458
  %v1461 = vmul.f32 0.5, %v1460
  %v1462 = vsub.f32 1.5, %v1461
  %v1463 = vmul.f32 %v1458, %v1462
  %vm1464 = vweird.f32 %v1447
  %vm1465 = vweird.f32 %v1458
  %vm1466 = vmor %vm1464, %vm1465
  %v1467 = vsel %vm1466, %v1458, %v1463
  %v1468 = vmul.f32 %v1434, %v1457
  %v1469 = vmul.f32 %v1435, %v1467
  %v1471 = vperm.slane %v1423, 0
  %v1473 = vmul.f32 %v1468, %v1471
  %v1474 = vmul.f32 %v1469, %v1471
  %v1476 = vperm.slane %v1425, 0
  %v1478 = vadd.f32 %v1473, %v1476
  %v1479 = vadd.f32 %v1474, %v1476
  %v1480 = vld [vmem:[%s2] sm:$0x3]
  %v1481 = vpack.c.bf16 %v1480, %v1480
  %v1482 = vpack.c.bf16 %v1479, %v1478
  %v1484 = vsel %vm304, %v1481, 0
  %1486 = vmatpush.bf16.msra.mxu0 0
  %1487 = vmatpush.bf16.msra.mxu0 0
  %1488 = vmatpush.bf16.msra.mxu0 0
  %1489 = vmatpush.bf16.msra.mxu0 0
  %1490 = vmatpush.bf16.msra.mxu0 0
  %1491 = vmatpush.bf16.msra.mxu0 0
  %1492 = vmatpush.bf16.msra.mxu0 0
  %1493 = vmatpush.bf16.msra.mxu0 %v1482
  %1494 = vmatmul.bf16.gmra.mxu0 %v1484
  %v1495 = vpop.f32.mrf.mxu0
  %v1496 = vadd.f32 0.0, %v1495
  %v1497 = vpop.f32.mrf.mxu0
  %1498 = vdwg.mxu0
  %vm1499 = vcmask 123904
  %v1500 = vsel %vm1499, %v1480, 0.0
  %1501 = vadd.xlane.f32.xlu0 %v1500
  %v1502 = vpop.xlane.xlu0 %1501
  %v1503 = vmax.f32 %v1502, 1e-09
  %v1504 = vrcp.pop %v1503
  %v1505 = vmul.f32 %v1496, %v1504
  %v1506 = vpack.c.bf16 %v1505, %v1505
  %v1507 = vld [vmem:[%s19] sm:$0xf]
  %v1508 = vld [vmem:[%s19 + $0x4] sm:$0xf]
  %v1509 = vld [vmem:[%s19 + $0x8] sm:$0xf]
  %v1510 = vld [vmem:[%s19 + $0xc] sm:$0xf]
  %v1511 = vld [vmem:[%s20] sm:$0x1]
  %v1513 = vperm.slane %v1511, 0
  %v1519 = vunpack.c.l.b16 %v1507
  %v1520 = vunpack.c.l.b16 %v1508
  %v1521 = vunpack.c.l.b16 %v1509
  %v1522 = vunpack.c.l.b16 %v1510
  %v1523 = vpack.c.b16 %v1520, %v1519
  %v1524 = vpack.c.b16 %v1522, %v1521
  %v1528 = vsel %vm128, %v1506, 0
  %1530 = vmatpush.bf16.msra.mxu0 0
  %1531 = vmatpush.bf16.msra.mxu0 0
  %1532 = vmatpush.bf16.msra.mxu0 0
  %1533 = vmatpush.bf16.msra.mxu0 0
  %1534 = vmatpush.bf16.msra.mxu0 0
  %1535 = vmatpush.bf16.msra.mxu0 0
  %1536 = vmatpush.bf16.msra.mxu0 %v1524
  %1537 = vmatpush.bf16.msra.mxu0 %v1523
  %1538 = vmatmul.bf16.gmra.mxu0 %v1528
  %v1539 = vpop.f32.mrf.mxu0
  %v1540 = vadd.f32 %v1513, %v1539
  %v1541 = vpop.f32.mrf.mxu0
  %1542 = vdwg.mxu0
  %1543 = vst [vmem:[%s21] sm:$0x3] %v1540
  // Predicated region
  $region86: #{forward.1} parent=0 // pred_check
    _
  $region87: #{forward.1} parent=0 // pred_check_branch
    %1545 = sbr.rel (0) target = $region89
  $region88: #{forward.1} parent=0 // pred_region
    _
  $region89: #{forward.1} parent=0 // pred_fallthru
    _
  // Predicated region
  $region90: #{forward.1} parent=0 // pred_check
    _
  $region91: #{forward.1} parent=0 // pred_check_branch
    %1547 = sbr.rel (0) target = $region93
  $region92: #{forward.1} parent=0 // pred_region
    _
  $region93: #{forward.1} parent=0 // pred_fallthru
    _

</llo_original>
